<compile_context>
chip_gen: v6e
topology: v6e:2x2x1
jax: 0.10.0
libtpu: 0.0.40
codegen_flags: <defaults>
</compile_context>

<pallas_src>
import math
import functools

import jax
import jax.numpy as jnp
from jax.experimental import pallas as pl
from jax.experimental.pallas import tpu as pltpu


# ----------------------------------------------------------------------------
# helpers
# ----------------------------------------------------------------------------
def _layer_norm(v, g, b, eps=1e-5):
    mu = jnp.mean(v, axis=-1, keepdims=True)
    var = jnp.mean((v - mu) ** 2, axis=-1, keepdims=True)
    return (v - mu) * jax.lax.rsqrt(var + eps) * g + b


def _vocab_tile(v):
    # lane-dense (multiple-of-128) vocab tile when V allows it, else the full dim
    for t in (2048, 1024, 512, 256, 128):
        if v % t == 0:
            return t
    return v


@functools.lru_cache(maxsize=1)
def _vmem_limit_bytes():
    """Explicit per-kernel VMEM limit derived from the chip (64 MiB/TC on v7x, 128 MiB on v5e/v6e)."""
    try:
        cap = int(pltpu.get_tpu_info().vmem_capacity_bytes)
    except Exception:
        cap = 64 << 20
    return max(32 << 20, min(cap * 3 // 4, 96 << 20))


def _pick_batch_tile(B, est_fn, budget, allow_full=False):
    """Largest divisor-of-B batch tile whose VMEM estimate fits `budget`.

    Unless `allow_full`, the tile is capped at B//2 so the "parallel" grid axis has
    at least two steps (v7x megacore; also gives the software pipeline slack).
    """
    cap = B if (allow_full or B == 1) else max(1, B // 2)
    for tb in range(cap, 0, -1):
        if B % tb == 0 and est_fn(tb) <= budget:
            return tb
    # TODO(synk): if even tb=1 exceeds the budget, add an S (row) grid axis as well.
    return 1


def _block_vmem_estimate(tb, S, D, Dff):
    """Rough per-grid-step VMEM footprint (bytes) of block_kernel at batch tile tb."""
    weights = 2 * 2 * (3 * D * D + D * D + 2 * D * Dff)      # bf16 weights, double-buffered
    io = 2 * 2 * tb * S * D * 4                              # x in + out blocks, double-buffered
    masks = 2 * (S * S * 4 + tb * S * 4)
    qkv = tb * S * 3 * D * (4 + 2)                           # f32 result + bf16 copy
    scores = 4 * tb * S * S * 4                              # bias + scores + exp temporaries
    ctx = tb * S * D * 4                                     # ctx scratch
    hmid = tb * S * Dff * (4 + 2)                            # FFN intermediate
    ln_tmp = 4 * tb * S * D * 4
    return weights + io + masks + qkv + scores + ctx + hmid + ln_tmp


# ----------------------------------------------------------------------------
# Pallas kernels
# ----------------------------------------------------------------------------
def block_kernel(x_ref, amask_ref, kbias_ref,
                 ln1g_ref, ln1b_ref, wqkv_ref, bqkv_ref, wo_ref, bo_ref,
                 ln2g_ref, ln2b_ref, w1_ref, b1_ref, w2_ref, b2_ref,
                 o_ref, ctx_ref, *, n_head):
    """One full transformer Block for a (TB,S,D) batch tile, resident in VMEM."""
    TB, S, D = x_ref.shape
    hd = D // n_head
    x = x_ref[...].astype(jnp.float32).reshape(TB * S, D)

    # ---- attention sublayer (pre-norm) --------------------------------------
    xn = _layer_norm(x, ln1g_ref[0], ln1b_ref[0])
    qkv = (jnp.dot(xn.astype(jnp.bfloat16), wqkv_ref[...],
                   preferred_element_type=jnp.float32) + bqkv_ref[0])
    qkv = qkv.astype(jnp.bfloat16)        # (TB*S, 3D); Q columns pre-scaled by 1/sqrt(hd)

    # combined additive bias (shared attn mask + per-batch key padding), built once
    bias = amask_ref[...][None, :, :] + kbias_ref[...]             # (TB, S, S) f32

    # one head at a time: peak live score memory is TB*S*S, not H*S*S
    for h in range(n_head):
        q = qkv[:, h * hd:(h + 1) * hd].reshape(TB, S, hd)
        k = qkv[:, D + h * hd:D + (h + 1) * hd].reshape(TB, S, hd)
        v = qkv[:, 2 * D + h * hd:2 * D + (h + 1) * hd].reshape(TB, S, hd)
        s = jnp.einsum("bqd,bkd->bqk", q, k,
                       preferred_element_type=jnp.float32) + bias  # (TB, S, S)
        m = jnp.max(s, axis=-1, keepdims=True)
        p = jnp.exp(s - m)
        p = p * pl.reciprocal(jnp.sum(p, axis=-1, keepdims=True), approx=True)
        ctx = jnp.einsum("bqk,bkd->bqd", p.astype(jnp.bfloat16), v,
                         preferred_element_type=jnp.float32)        # (TB, S, hd)
        ctx_ref[:, h * hd:(h + 1) * hd] = ctx.reshape(TB * S, hd)

    attn_out = (jnp.dot(ctx_ref[...].astype(jnp.bfloat16), wo_ref[...],
                        preferred_element_type=jnp.float32) + bo_ref[0])
    x = x + attn_out

    # ---- FFN sublayer (pre-norm) ---------------------------------------------
    xn2 = _layer_norm(x, ln2g_ref[0], ln2b_ref[0])
    hmid = jnp.maximum(
        jnp.dot(xn2.astype(jnp.bfloat16), w1_ref[...],
                preferred_element_type=jnp.float32) + b1_ref[0], 0.0)
    ffn = (jnp.dot(hmid.astype(jnp.bfloat16), w2_ref[...],
                   preferred_element_type=jnp.float32) + b2_ref[0])
    x = x + ffn
    o_ref[...] = x.reshape(TB, S, D).astype(o_ref.dtype)


def proj_kernel(x_ref, w_ref, b_ref, o_ref):
    """word_prj for a (batch tile, vocab tile): bf16 (TB*S, D) @ (D, TV) + b."""
    TB, S, D = x_ref.shape
    x = x_ref[...].reshape(TB * S, D)          # input already bf16 (cast once in wrapper)
    y = jnp.dot(x, w_ref[...], preferred_element_type=jnp.float32) + b_ref[0]
    # TODO(synk): logits could be emitted bf16 to halve the largest HBM store if the
    # downstream loss/sampling tolerates it; kept f32 to match the reference.
    o_ref[...] = y.reshape(TB, S, -1).astype(o_ref.dtype)


# ----------------------------------------------------------------------------
# pallas_call wrappers
# ----------------------------------------------------------------------------
def run_block(h, amask, kbias, blk, n_head, vmem_limit):
    """One transformer Block: h (B,S,D) f32 -> h (B,S,D) f32 (single fused kernel)."""
    B, S, D = h.shape
    Dff = blk["w1"].shape[1]

    tb = _pick_batch_tile(B, lambda t: _block_vmem_estimate(t, S, D, Dff),
                          int(vmem_limit * 0.9))

    flops = B * S * (8 * D * D + 4 * S * D + 4 * D * Dff)
    bytes_accessed = (2 * B * S * D * 4 + S * S * 4 + B * S * 4
                      + 2 * (4 * D * D + 2 * D * Dff))

    const = lambda b: (0, 0)
    tile3 = lambda b: (b, 0, 0)
    return pl.pallas_call(
        functools.partial(block_kernel, n_head=n_head),
        out_shape=jax.ShapeDtypeStruct((B, S, D), jnp.float32),
        grid=(B // tb,),
        in_specs=[
            pl.BlockSpec((tb, S, D), tile3),                               # residual stream tile
            pl.BlockSpec((S, S), const),                                   # shared additive attn mask
            pl.BlockSpec((tb, 1, S), tile3),                               # per-batch key-padding bias
            pl.BlockSpec((1, D), const), pl.BlockSpec((1, D), const),      # ln1 gamma/beta
            pl.BlockSpec((D, 3 * D), const), pl.BlockSpec((1, 3 * D), const),  # fused qkv
            pl.BlockSpec((D, D), const), pl.BlockSpec((1, D), const),      # out_proj
            pl.BlockSpec((1, D), const), pl.BlockSpec((1, D), const),      # ln2 gamma/beta
            pl.BlockSpec((D, Dff), const), pl.BlockSpec((1, Dff), const),  # ffn w1/b1
            pl.BlockSpec((Dff, D), const), pl.BlockSpec((1, D), const),    # ffn w2/b2
        ],
        out_specs=pl.BlockSpec((tb, S, D), tile3),
        scratch_shapes=[pltpu.VMEM((tb * S, D), jnp.float32)],             # per-tile ctx buffer
        compiler_params=pltpu.CompilerParams(
            dimension_semantics=("parallel",),
            vmem_limit_bytes=vmem_limit),
        cost_estimate=pl.CostEstimate(
            flops=flops, transcendentals=B * n_head * S * S,
            bytes_accessed=bytes_accessed),
    )(h, amask, kbias,
      blk["ln1_g"], blk["ln1_b"], blk["wqkv"], blk["bqkv"], blk["wo"], blk["bo"],
      blk["ln2_g"], blk["ln2_b"], blk["w1"], blk["b1"], blk["w2"], blk["b2"])


def run_proj(h_bf16, w, b, vmem_limit):
    B, S, D = h_bf16.shape
    V = w.shape[1]
    tv = _vocab_tile(V)

    def est(tb):
        return (2 * tb * S * D * 2 + 2 * (D * tv * 2 + tv * 4) + 3 * tb * S * tv * 4)

    tb = _pick_batch_tile(B, est, int(vmem_limit * 0.9),
                          allow_full=(V // tv) >= 2)

    return pl.pallas_call(
        proj_kernel,
        out_shape=jax.ShapeDtypeStruct((B, S, V), jnp.float32),
        # batch axis innermost: the (D, tv) weight block index only changes with the
        # outer (vocab) axis, so the whole projection weight streams from HBM once.
        grid=(V // tv, B // tb),
        in_specs=[
            pl.BlockSpec((tb, S, D), lambda v, bb: (bb, 0, 0)),
            pl.BlockSpec((D, tv), lambda v, bb: (0, v)),
            pl.BlockSpec((1, tv), lambda v, bb: (0, v)),
        ],
        out_specs=pl.BlockSpec((tb, S, tv), lambda v, bb: (bb, 0, v)),
        compiler_params=pltpu.CompilerParams(
            dimension_semantics=("parallel", "parallel"),
            vmem_limit_bytes=vmem_limit),
        cost_estimate=pl.CostEstimate(
            flops=2 * B * S * D * V, transcendentals=0,
            bytes_accessed=B * S * D * 2 + D * V * 2 + V * 4 + B * S * V * 4),
    )(h_bf16, w, b)


# ----------------------------------------------------------------------------
# Parameters (deterministic, synthetic).  Weights are stored pre-transposed
# (x @ W layout) in bf16; biases / LayerNorm params stay f32.  The softmax
# scale 1/sqrt(head_dim) is folded into the Q columns of the QKV projection.
# ----------------------------------------------------------------------------
def init_params(key, voc_size, max_len, d_emb, d_inner, n_layer, n_head, pad_idx=0):
    k_tok, k_prj, k_blocks = jax.random.split(key, 3)

    tok_emb = jax.random.normal(k_tok, (voc_size, d_emb), jnp.float32) * 0.02
    tok_emb = tok_emb.at[pad_idx].set(0.0)          # nn.Embedding padding_idx row

    # sinusoidal positional table, size 2*max_len as in the module
    L = 2 * max_len
    pos = jnp.arange(L, dtype=jnp.float32)[:, None]
    div = jnp.exp(jnp.arange(0, d_emb, 2, dtype=jnp.float32) *
                  (-math.log(10000.0) / d_emb))
    pe = jnp.zeros((L, d_emb), jnp.float32)
    pe = pe.at[:, 0::2].set(jnp.sin(pos * div))
    pe = pe.at[:, 1::2].set(jnp.cos(pos * div))

    q_scale = (d_emb // n_head) ** -0.5             # folded softmax scale

    blocks = []
    bkeys = jax.random.split(k_blocks, n_layer)
    for l in range(n_layer):
        k = jax.random.split(bkeys[l], 4)
        s_in = 1.0 / math.sqrt(d_emb)
        s_ff = 1.0 / math.sqrt(d_inner)
        # PyTorch layouts are (out, in); store transposed for x @ W in-kernel.
        wqkv = (jax.random.normal(k[0], (3 * d_emb, d_emb), jnp.float32) * s_in).T
        wqkv = wqkv.at[:, :d_emb].multiply(q_scale)          # fold 1/sqrt(hd) into Wq
        bqkv = jnp.zeros((1, 3 * d_emb), jnp.float32)
        bqkv = bqkv.at[:, :d_emb].multiply(q_scale)          # keep semantics if bq != 0
        blocks.append(dict(
            ln1_g=jnp.ones((1, d_emb), jnp.float32),
            ln1_b=jnp.zeros((1, d_emb), jnp.float32),
            wqkv=wqkv.astype(jnp.bfloat16),                            # (D, 3D)
            bqkv=bqkv,
            wo=(jax.random.normal(k[1], (d_emb, d_emb), jnp.float32) * s_in
                ).T.astype(jnp.bfloat16),                              # (D, D)
            bo=jnp.zeros((1, d_emb), jnp.float32),
            ln2_g=jnp.ones((1, d_emb), jnp.float32),
            ln2_b=jnp.zeros((1, d_emb), jnp.float32),
            w1=(jax.random.normal(k[2], (d_inner, d_emb), jnp.float32) * s_in
                ).T.astype(jnp.bfloat16),                              # (D, Dff)
            b1=jnp.zeros((1, d_inner), jnp.float32),
            w2=(jax.random.normal(k[3], (d_emb, d_inner), jnp.float32) * s_ff
                ).T.astype(jnp.bfloat16),                              # (Dff, D)
            b2=jnp.zeros((1, d_emb), jnp.float32),
        ))

    # kaiming_normal_(nonlinearity='linear'): std = 1/sqrt(fan_in)
    word_prj_w = (jax.random.normal(k_prj, (voc_size, d_emb), jnp.float32)
                  / math.sqrt(d_emb)).T.astype(jnp.bfloat16)           # (D, V)
    word_prj_b = jnp.zeros((1, voc_size), jnp.float32)

    return dict(token_emb=tok_emb, pos_emb=pe, blocks=blocks,
                word_prj_w=word_prj_w, word_prj_b=word_prj_b)


# ----------------------------------------------------------------------------
# Forward pass (glue in plain JAX, hot path in Pallas)
# ----------------------------------------------------------------------------
def gpt2_forward(params, tokens, n_head, key_mask=None, atn_mask=None):
    """tokens: (seq, batch) int32 — PyTorch layout.  Returns (seq, batch, voc) f32."""
    S, B = tokens.shape
    vmem_limit = _vmem_limit_bytes()

    # TODO(synk): embedding gather stays in plain JAX (tiny; no Pallas gather here)
    tok = jnp.take(params["token_emb"], tokens, axis=0)          # (S, B, D)
    pos = params["pos_emb"][:S][:, None, :]                      # (S, 1, D)
    h = jnp.transpose((tok + pos).astype(jnp.float32), (1, 0, 2))  # (B, S, D)

    # batch-invariant additive attn mask (S,S) + per-batch key-padding bias (B,1,S);
    # the two are combined into a single bias inside the block kernel.
    amask = (jnp.zeros((S, S), jnp.float32) if atn_mask is None
             else atn_mask.astype(jnp.float32))
    if key_mask is None:                     # True = ignore key (key_padding_mask)
        kbias = jnp.zeros((B, 1, S), jnp.float32)
    else:
        kbias = jnp.where(key_mask[:, None, :], -1e9, 0.0).astype(jnp.float32)

    for blk in params["blocks"]:
        h = run_block(h, amask, kbias, blk, n_head, vmem_limit)

    # single wrapper-side cast so the vocab projection streams bf16 activations
    logits = run_proj(h.astype(jnp.bfloat16),
                      params["word_prj_w"], params["word_prj_b"], vmem_limit)
    return jnp.transpose(logits, (1, 0, 2))                      # (S, B, V)


# ----------------------------------------------------------------------------
if __name__ == "__main__":
    # small, MHA-consistent shapes (d_emb must be divisible by n_head)
    VOC_SIZE, MAX_LEN = 20, 16
    D_EMB, N_HEAD, D_INNER, N_LAYER = 32, 4, 64, 2
    SEQ, BATCH, PAD_IDX = 8, 2, 0

    root = jax.random.PRNGKey(0)
    k_param, k_tok = jax.random.split(root)
    params = init_params(k_param, VOC_SIZE, MAX_LEN, D_EMB, D_INNER,
                         N_LAYER, N_HEAD, PAD_IDX)

    tokens = jax.random.randint(k_tok, (SEQ, BATCH), 0, VOC_SIZE, dtype=jnp.int32)
    # causal additive mask, as a GPT would pass for atn_mask
    causal = jnp.where(jnp.triu(jnp.ones((SEQ, SEQ), bool), k=1),
                       -1e9, 0.0).astype(jnp.float32)

    fwd = jax.jit(functools.partial(gpt2_forward, n_head=N_HEAD))
    out = fwd(params, tokens, atn_mask=causal)
    out = jax.block_until_ready(out)
    assert out.shape == (SEQ, BATCH, VOC_SIZE)
    assert bool(jnp.all(jnp.isfinite(out)))
    print("KERNEL_OK")
</pallas_src>

<mosaic_0001>
module attributes {stable_mosaic.version = 11 : i64} {
  func.func @block_kernel(%arg0: i32, %arg1: memref<1x8x32xf32, #tpu.memory_space<vmem>>, %arg2: memref<8x8xf32, #tpu.memory_space<vmem>>, %arg3: memref<1x1x8xf32, #tpu.memory_space<vmem>>, %arg4: memref<1x32xf32, #tpu.memory_space<vmem>>, %arg5: memref<1x32xf32, #tpu.memory_space<vmem>>, %arg6: memref<32x96xbf16, #tpu.memory_space<vmem>>, %arg7: memref<1x96xf32, #tpu.memory_space<vmem>>, %arg8: memref<32x32xbf16, #tpu.memory_space<vmem>>, %arg9: memref<1x32xf32, #tpu.memory_space<vmem>>, %arg10: memref<1x32xf32, #tpu.memory_space<vmem>>, %arg11: memref<1x32xf32, #tpu.memory_space<vmem>>, %arg12: memref<32x64xbf16, #tpu.memory_space<vmem>>, %arg13: memref<1x64xf32, #tpu.memory_space<vmem>>, %arg14: memref<64x32xbf16, #tpu.memory_space<vmem>>, %arg15: memref<1x32xf32, #tpu.memory_space<vmem>>, %arg16: memref<1x8x32xf32, #tpu.memory_space<vmem>>, %arg17: memref<8x32xf32, #tpu.memory_space<vmem>>) attributes {dimension_semantics = [#tpu.dimension_semantics<parallel>], iteration_bounds = array<i64: 2>, scalar_prefetch = 0 : i64, scratch_operands = 1 : i64, tpu.core_type = #tpu.core_type<tc>, window_params = [{transform_indices = @transform_0, window_bounds = array<i64: 1, 8, 32>}, {pipeline_mode = #tpu.pipeline_mode<synchronous>, transform_indices = @transform_1, window_bounds = array<i64: 8, 8>}, {transform_indices = @transform_2, window_bounds = array<i64: 1, 1, 8>}, {pipeline_mode = #tpu.pipeline_mode<synchronous>, transform_indices = @transform_3, window_bounds = array<i64: 1, 32>}, {pipeline_mode = #tpu.pipeline_mode<synchronous>, transform_indices = @transform_4, window_bounds = array<i64: 1, 32>}, {pipeline_mode = #tpu.pipeline_mode<synchronous>, transform_indices = @transform_5, window_bounds = array<i64: 32, 96>}, {pipeline_mode = #tpu.pipeline_mode<synchronous>, transform_indices = @transform_6, window_bounds = array<i64: 1, 96>}, {pipeline_mode = #tpu.pipeline_mode<synchronous>, transform_indices = @transform_7, window_bounds = array<i64: 32, 32>}, {pipeline_mode = #tpu.pipeline_mode<synchronous>, transform_indices = @transform_8, window_bounds = array<i64: 1, 32>}, {pipeline_mode = #tpu.pipeline_mode<synchronous>, transform_indices = @transform_9, window_bounds = array<i64: 1, 32>}, {pipeline_mode = #tpu.pipeline_mode<synchronous>, transform_indices = @transform_10, window_bounds = array<i64: 1, 32>}, {pipeline_mode = #tpu.pipeline_mode<synchronous>, transform_indices = @transform_11, window_bounds = array<i64: 32, 64>}, {pipeline_mode = #tpu.pipeline_mode<synchronous>, transform_indices = @transform_12, window_bounds = array<i64: 1, 64>}, {pipeline_mode = #tpu.pipeline_mode<synchronous>, transform_indices = @transform_13, window_bounds = array<i64: 64, 32>}, {pipeline_mode = #tpu.pipeline_mode<synchronous>, transform_indices = @transform_14, window_bounds = array<i64: 1, 32>}, {transform_indices = @transform_15, window_bounds = array<i64: 1, 8, 32>}]} {
    %c0 = arith.constant 0 : index
    %c0_0 = arith.constant 0 : index
    %c0_1 = arith.constant 0 : index
    %0 = vector.load %arg1[%c0, %c0_0, %c0_1] : memref<1x8x32xf32, #tpu.memory_space<vmem>>, vector<1x8x32xf32>
    %1 = vector.shape_cast %0 : vector<1x8x32xf32> to vector<8x32xf32>
    %c0_2 = arith.constant 0 : index
    %c0_3 = arith.constant 0 : index
    %2 = vector.load %arg4[%c0_2, %c0_3] : memref<1x32xf32, #tpu.memory_space<vmem>>, vector<1x32xf32>
    %3 = vector.shape_cast %2 : vector<1x32xf32> to vector<32xf32>
    %c0_4 = arith.constant 0 : index
    %c0_5 = arith.constant 0 : index
    %4 = vector.load %arg5[%c0_4, %c0_5] : memref<1x32xf32, #tpu.memory_space<vmem>>, vector<1x32xf32>
    %5 = vector.shape_cast %4 : vector<1x32xf32> to vector<32xf32>
    %cst = arith.constant dense<0.000000e+00> : vector<8xf32>
    %6 = vector.multi_reduction <add>, %1, %cst [1] : vector<8x32xf32> to vector<8xf32>
    %7 = vector.shape_cast %6 : vector<8xf32> to vector<8x1xf32>
    %cst_6 = arith.constant 3.200000e+01 : f32
    %8 = vector.broadcast %cst_6 : f32 to vector<8x1xf32>
    %9 = arith.divf %7, %8 : vector<8x1xf32>
    %10 = vector.broadcast %9 : vector<8x1xf32> to vector<8x32xf32>
    %11 = arith.subf %1, %10 : vector<8x32xf32>
    %12 = arith.mulf %11, %11 : vector<8x32xf32>
    %cst_7 = arith.constant dense<0.000000e+00> : vector<8xf32>
    %13 = vector.multi_reduction <add>, %12, %cst_7 [1] : vector<8x32xf32> to vector<8xf32>
    %14 = vector.shape_cast %13 : vector<8xf32> to vector<8x1xf32>
    %cst_8 = arith.constant 3.200000e+01 : f32
    %15 = vector.broadcast %cst_8 : f32 to vector<8x1xf32>
    %16 = arith.divf %14, %15 : vector<8x1xf32>
    %17 = vector.broadcast %9 : vector<8x1xf32> to vector<8x32xf32>
    %18 = arith.subf %1, %17 : vector<8x32xf32>
    %cst_9 = arith.constant 9.99999974E-6 : f32
    %19 = vector.broadcast %cst_9 : f32 to vector<8x1xf32>
    %20 = arith.addf %16, %19 : vector<8x1xf32>
    %21 = math.rsqrt %20 : vector<8x1xf32>
    %22 = vector.broadcast %21 : vector<8x1xf32> to vector<8x32xf32>
    %23 = arith.mulf %18, %22 : vector<8x32xf32>
    %24 = vector.shape_cast %3 : vector<32xf32> to vector<1x32xf32>
    %25 = vector.broadcast %24 : vector<1x32xf32> to vector<8x32xf32>
    %26 = arith.mulf %23, %25 : vector<8x32xf32>
    %27 = vector.shape_cast %5 : vector<32xf32> to vector<1x32xf32>
    %28 = vector.broadcast %27 : vector<1x32xf32> to vector<8x32xf32>
    %29 = arith.addf %26, %28 : vector<8x32xf32>
    %30 = arith.truncf %29 : vector<8x32xf32> to vector<8x32xbf16>
    %c0_10 = arith.constant 0 : index
    %c0_11 = arith.constant 0 : index
    %31 = vector.load %arg6[%c0_10, %c0_11] : memref<32x96xbf16, #tpu.memory_space<vmem>>, vector<32x96xbf16>
    %cst_12 = arith.constant dense<0.000000e+00> : vector<8x96xf32>
    %32 = tpu.matmul %30, %31, %cst_12 {dimension_numbers = #tpu.dot_dimension_numbers<[1], [0], [0], [1], [0, 0, 1, 1], [], []>} : vector<8x32xbf16>, vector<32x96xbf16>, vector<8x96xf32> -> vector<8x96xf32>
    %c0_13 = arith.constant 0 : index
    %c0_14 = arith.constant 0 : index
    %33 = vector.load %arg7[%c0_13, %c0_14] : memref<1x96xf32, #tpu.memory_space<vmem>>, vector<1x96xf32>
    %34 = vector.shape_cast %33 : vector<1x96xf32> to vector<96xf32>
    %35 = vector.shape_cast %34 : vector<96xf32> to vector<1x96xf32>
    %36 = vector.broadcast %35 : vector<1x96xf32> to vector<8x96xf32>
    %37 = arith.addf %32, %36 : vector<8x96xf32>
    %38 = arith.truncf %37 : vector<8x96xf32> to vector<8x96xbf16>
    %c0_15 = arith.constant 0 : index
    %c0_16 = arith.constant 0 : index
    %39 = vector.load %arg2[%c0_15, %c0_16] : memref<8x8xf32, #tpu.memory_space<vmem>>, vector<8x8xf32>
    %40 = vector.shape_cast %39 : vector<8x8xf32> to vector<1x8x8xf32>
    %c0_17 = arith.constant 0 : index
    %c0_18 = arith.constant 0 : index
    %c0_19 = arith.constant 0 : index
    %41 = vector.load %arg3[%c0_17, %c0_18, %c0_19] : memref<1x1x8xf32, #tpu.memory_space<vmem>>, vector<1x1x8xf32>
    %42 = vector.broadcast %41 : vector<1x1x8xf32> to vector<1x8x8xf32>
    %43 = arith.addf %40, %42 : vector<1x8x8xf32>
    %44 = vector.extract_strided_slice %38 {offsets = [0, 0], sizes = [8, 8], strides = [1, 1]} : vector<8x96xbf16> to vector<8x8xbf16>
    %45 = vector.shape_cast %44 : vector<8x8xbf16> to vector<1x8x8xbf16>
    %46 = vector.extract_strided_slice %38 {offsets = [0, 32], sizes = [8, 8], strides = [1, 1]} : vector<8x96xbf16> to vector<8x8xbf16>
    %47 = vector.shape_cast %46 : vector<8x8xbf16> to vector<1x8x8xbf16>
    %48 = vector.extract_strided_slice %38 {offsets = [0, 64], sizes = [8, 8], strides = [1, 1]} : vector<8x96xbf16> to vector<8x8xbf16>
    %49 = vector.shape_cast %48 : vector<8x8xbf16> to vector<1x8x8xbf16>
    "tpu.trace_start"() <{level = 10 : i32, message = "bqd,bkd->bqk"}> : () -> ()
    %cst_20 = arith.constant dense<0.000000e+00> : vector<1x8x8xf32>
    %50 = tpu.matmul %45, %47, %cst_20 {dimension_numbers = #tpu.dot_dimension_numbers<[2], [2], [1], [1], [0, 0, 0, 1, 1, 1], [0], [0]>} : vector<1x8x8xbf16>, vector<1x8x8xbf16>, vector<1x8x8xf32> -> vector<1x8x8xf32>
    "tpu.trace_stop"() : () -> ()
    %51 = arith.addf %50, %43 : vector<1x8x8xf32>
    %cst_21 = arith.constant dense<0xFF800000> : vector<1x8xf32>
    %52 = vector.multi_reduction <maximumf>, %51, %cst_21 [2] : vector<1x8x8xf32> to vector<1x8xf32>
    %53 = vector.shape_cast %52 : vector<1x8xf32> to vector<1x8x1xf32>
    %54 = vector.broadcast %53 : vector<1x8x1xf32> to vector<1x8x8xf32>
    %55 = arith.subf %51, %54 : vector<1x8x8xf32>
    %56 = math.exp %55 : vector<1x8x8xf32>
    %cst_22 = arith.constant dense<0.000000e+00> : vector<1x8xf32>
    %57 = vector.multi_reduction <add>, %56, %cst_22 [2] : vector<1x8x8xf32> to vector<1x8xf32>
    %58 = vector.shape_cast %57 : vector<1x8xf32> to vector<1x8x1xf32>
    %59 = tpu.reciprocal %58 {approx = true} : vector<1x8x1xf32> -> vector<1x8x1xf32>
    %60 = vector.broadcast %59 : vector<1x8x1xf32> to vector<1x8x8xf32>
    %61 = arith.mulf %56, %60 : vector<1x8x8xf32>
    %62 = arith.truncf %61 : vector<1x8x8xf32> to vector<1x8x8xbf16>
    "tpu.trace_start"() <{level = 10 : i32, message = "bqk,bkd->bqd"}> : () -> ()
    %cst_23 = arith.constant dense<0.000000e+00> : vector<1x8x8xf32>
    %63 = tpu.matmul %62, %49, %cst_23 {dimension_numbers = #tpu.dot_dimension_numbers<[2], [1], [1], [2], [0, 0, 0, 1, 1, 2], [0], [0]>} : vector<1x8x8xbf16>, vector<1x8x8xbf16>, vector<1x8x8xf32> -> vector<1x8x8xf32>
    "tpu.trace_stop"() : () -> ()
    %64 = vector.shape_cast %63 : vector<1x8x8xf32> to vector<8x8xf32>
    %c0_24 = arith.constant 0 : index
    %c0_25 = arith.constant 0 : index
    %65 = vector.load %arg17[%c0_24, %c0_25] : memref<8x32xf32, #tpu.memory_space<vmem>>, vector<8x8xf32>
    tpu.vector_store %arg17[%c0_24, %c0_25], %64 {strides = array<i32>} : memref<8x32xf32, #tpu.memory_space<vmem>>, vector<8x8xf32>,
    %66 = vector.extract_strided_slice %38 {offsets = [0, 8], sizes = [8, 8], strides = [1, 1]} : vector<8x96xbf16> to vector<8x8xbf16>
    %67 = vector.shape_cast %66 : vector<8x8xbf16> to vector<1x8x8xbf16>
    %68 = vector.extract_strided_slice %38 {offsets = [0, 40], sizes = [8, 8], strides = [1, 1]} : vector<8x96xbf16> to vector<8x8xbf16>
    %69 = vector.shape_cast %68 : vector<8x8xbf16> to vector<1x8x8xbf16>
    %70 = vector.extract_strided_slice %38 {offsets = [0, 72], sizes = [8, 8], strides = [1, 1]} : vector<8x96xbf16> to vector<8x8xbf16>
    %71 = vector.shape_cast %70 : vector<8x8xbf16> to vector<1x8x8xbf16>
    "tpu.trace_start"() <{level = 10 : i32, message = "bqd,bkd->bqk"}> : () -> ()
    %cst_26 = arith.constant dense<0.000000e+00> : vector<1x8x8xf32>
    %72 = tpu.matmul %67, %69, %cst_26 {dimension_numbers = #tpu.dot_dimension_numbers<[2], [2], [1], [1], [0, 0, 0, 1, 1, 1], [0], [0]>} : vector<1x8x8xbf16>, vector<1x8x8xbf16>, vector<1x8x8xf32> -> vector<1x8x8xf32>
    "tpu.trace_stop"() : () -> ()
    %73 = arith.addf %72, %43 : vector<1x8x8xf32>
    %cst_27 = arith.constant dense<0xFF800000> : vector<1x8xf32>
    %74 = vector.multi_reduction <maximumf>, %73, %cst_27 [2] : vector<1x8x8xf32> to vector<1x8xf32>
    %75 = vector.shape_cast %74 : vector<1x8xf32> to vector<1x8x1xf32>
    %76 = vector.broadcast %75 : vector<1x8x1xf32> to vector<1x8x8xf32>
    %77 = arith.subf %73, %76 : vector<1x8x8xf32>
    %78 = math.exp %77 : vector<1x8x8xf32>
    %cst_28 = arith.constant dense<0.000000e+00> : vector<1x8xf32>
    %79 = vector.multi_reduction <add>, %78, %cst_28 [2] : vector<1x8x8xf32> to vector<1x8xf32>
    %80 = vector.shape_cast %79 : vector<1x8xf32> to vector<1x8x1xf32>
    %81 = tpu.reciprocal %80 {approx = true} : vector<1x8x1xf32> -> vector<1x8x1xf32>
    %82 = vector.broadcast %81 : vector<1x8x1xf32> to vector<1x8x8xf32>
    %83 = arith.mulf %78, %82 : vector<1x8x8xf32>
    %84 = arith.truncf %83 : vector<1x8x8xf32> to vector<1x8x8xbf16>
    "tpu.trace_start"() <{level = 10 : i32, message = "bqk,bkd->bqd"}> : () -> ()
    %cst_29 = arith.constant dense<0.000000e+00> : vector<1x8x8xf32>
    %85 = tpu.matmul %84, %71, %cst_29 {dimension_numbers = #tpu.dot_dimension_numbers<[2], [1], [1], [2], [0, 0, 0, 1, 1, 2], [0], [0]>} : vector<1x8x8xbf16>, vector<1x8x8xbf16>, vector<1x8x8xf32> -> vector<1x8x8xf32>
    "tpu.trace_stop"() : () -> ()
    %86 = vector.shape_cast %85 : vector<1x8x8xf32> to vector<8x8xf32>
    %c0_30 = arith.constant 0 : index
    %c8 = arith.constant 8 : index
    %87 = vector.load %arg17[%c0_30, %c8] : memref<8x32xf32, #tpu.memory_space<vmem>>, vector<8x8xf32>
    tpu.vector_store %arg17[%c0_30, %c8], %86 {strides = array<i32>} : memref<8x32xf32, #tpu.memory_space<vmem>>, vector<8x8xf32>,
    %88 = vector.extract_strided_slice %38 {offsets = [0, 16], sizes = [8, 8], strides = [1, 1]} : vector<8x96xbf16> to vector<8x8xbf16>
    %89 = vector.shape_cast %88 : vector<8x8xbf16> to vector<1x8x8xbf16>
    %90 = vector.extract_strided_slice %38 {offsets = [0, 48], sizes = [8, 8], strides = [1, 1]} : vector<8x96xbf16> to vector<8x8xbf16>
    %91 = vector.shape_cast %90 : vector<8x8xbf16> to vector<1x8x8xbf16>
    %92 = vector.extract_strided_slice %38 {offsets = [0, 80], sizes = [8, 8], strides = [1, 1]} : vector<8x96xbf16> to vector<8x8xbf16>
    %93 = vector.shape_cast %92 : vector<8x8xbf16> to vector<1x8x8xbf16>
    "tpu.trace_start"() <{level = 10 : i32, message = "bqd,bkd->bqk"}> : () -> ()
    %cst_31 = arith.constant dense<0.000000e+00> : vector<1x8x8xf32>
    %94 = tpu.matmul %89, %91, %cst_31 {dimension_numbers = #tpu.dot_dimension_numbers<[2], [2], [1], [1], [0, 0, 0, 1, 1, 1], [0], [0]>} : vector<1x8x8xbf16>, vector<1x8x8xbf16>, vector<1x8x8xf32> -> vector<1x8x8xf32>
    "tpu.trace_stop"() : () -> ()
    %95 = arith.addf %94, %43 : vector<1x8x8xf32>
    %cst_32 = arith.constant dense<0xFF800000> : vector<1x8xf32>
    %96 = vector.multi_reduction <maximumf>, %95, %cst_32 [2] : vector<1x8x8xf32> to vector<1x8xf32>
    %97 = vector.shape_cast %96 : vector<1x8xf32> to vector<1x8x1xf32>
    %98 = vector.broadcast %97 : vector<1x8x1xf32> to vector<1x8x8xf32>
    %99 = arith.subf %95, %98 : vector<1x8x8xf32>
    %100 = math.exp %99 : vector<1x8x8xf32>
    %cst_33 = arith.constant dense<0.000000e+00> : vector<1x8xf32>
    %101 = vector.multi_reduction <add>, %100, %cst_33 [2] : vector<1x8x8xf32> to vector<1x8xf32>
    %102 = vector.shape_cast %101 : vector<1x8xf32> to vector<1x8x1xf32>
    %103 = tpu.reciprocal %102 {approx = true} : vector<1x8x1xf32> -> vector<1x8x1xf32>
    %104 = vector.broadcast %103 : vector<1x8x1xf32> to vector<1x8x8xf32>
    %105 = arith.mulf %100, %104 : vector<1x8x8xf32>
    %106 = arith.truncf %105 : vector<1x8x8xf32> to vector<1x8x8xbf16>
    "tpu.trace_start"() <{level = 10 : i32, message = "bqk,bkd->bqd"}> : () -> ()
    %cst_34 = arith.constant dense<0.000000e+00> : vector<1x8x8xf32>
    %107 = tpu.matmul %106, %93, %cst_34 {dimension_numbers = #tpu.dot_dimension_numbers<[2], [1], [1], [2], [0, 0, 0, 1, 1, 2], [0], [0]>} : vector<1x8x8xbf16>, vector<1x8x8xbf16>, vector<1x8x8xf32> -> vector<1x8x8xf32>
    "tpu.trace_stop"() : () -> ()
    %108 = vector.shape_cast %107 : vector<1x8x8xf32> to vector<8x8xf32>
    %c0_35 = arith.constant 0 : index
    %c16 = arith.constant 16 : index
    %109 = vector.load %arg17[%c0_35, %c16] : memref<8x32xf32, #tpu.memory_space<vmem>>, vector<8x8xf32>
    tpu.vector_store %arg17[%c0_35, %c16], %108 {strides = array<i32>} : memref<8x32xf32, #tpu.memory_space<vmem>>, vector<8x8xf32>,
    %110 = vector.extract_strided_slice %38 {offsets = [0, 24], sizes = [8, 8], strides = [1, 1]} : vector<8x96xbf16> to vector<8x8xbf16>
    %111 = vector.shape_cast %110 : vector<8x8xbf16> to vector<1x8x8xbf16>
    %112 = vector.extract_strided_slice %38 {offsets = [0, 56], sizes = [8, 8], strides = [1, 1]} : vector<8x96xbf16> to vector<8x8xbf16>
    %113 = vector.shape_cast %112 : vector<8x8xbf16> to vector<1x8x8xbf16>
    %114 = vector.extract_strided_slice %38 {offsets = [0, 88], sizes = [8, 8], strides = [1, 1]} : vector<8x96xbf16> to vector<8x8xbf16>
    %115 = vector.shape_cast %114 : vector<8x8xbf16> to vector<1x8x8xbf16>
    "tpu.trace_start"() <{level = 10 : i32, message = "bqd,bkd->bqk"}> : () -> ()
    %cst_36 = arith.constant dense<0.000000e+00> : vector<1x8x8xf32>
    %116 = tpu.matmul %111, %113, %cst_36 {dimension_numbers = #tpu.dot_dimension_numbers<[2], [2], [1], [1], [0, 0, 0, 1, 1, 1], [0], [0]>} : vector<1x8x8xbf16>, vector<1x8x8xbf16>, vector<1x8x8xf32> -> vector<1x8x8xf32>
    "tpu.trace_stop"() : () -> ()
    %117 = arith.addf %116, %43 : vector<1x8x8xf32>
    %cst_37 = arith.constant dense<0xFF800000> : vector<1x8xf32>
    %118 = vector.multi_reduction <maximumf>, %117, %cst_37 [2] : vector<1x8x8xf32> to vector<1x8xf32>
    %119 = vector.shape_cast %118 : vector<1x8xf32> to vector<1x8x1xf32>
    %120 = vector.broadcast %119 : vector<1x8x1xf32> to vector<1x8x8xf32>
    %121 = arith.subf %117, %120 : vector<1x8x8xf32>
    %122 = math.exp %121 : vector<1x8x8xf32>
    %cst_38 = arith.constant dense<0.000000e+00> : vector<1x8xf32>
    %123 = vector.multi_reduction <add>, %122, %cst_38 [2] : vector<1x8x8xf32> to vector<1x8xf32>
    %124 = vector.shape_cast %123 : vector<1x8xf32> to vector<1x8x1xf32>
    %125 = tpu.reciprocal %124 {approx = true} : vector<1x8x1xf32> -> vector<1x8x1xf32>
    %126 = vector.broadcast %125 : vector<1x8x1xf32> to vector<1x8x8xf32>
    %127 = arith.mulf %122, %126 : vector<1x8x8xf32>
    %128 = arith.truncf %127 : vector<1x8x8xf32> to vector<1x8x8xbf16>
    "tpu.trace_start"() <{level = 10 : i32, message = "bqk,bkd->bqd"}> : () -> ()
    %cst_39 = arith.constant dense<0.000000e+00> : vector<1x8x8xf32>
    %129 = tpu.matmul %128, %115, %cst_39 {dimension_numbers = #tpu.dot_dimension_numbers<[2], [1], [1], [2], [0, 0, 0, 1, 1, 2], [0], [0]>} : vector<1x8x8xbf16>, vector<1x8x8xbf16>, vector<1x8x8xf32> -> vector<1x8x8xf32>
    "tpu.trace_stop"() : () -> ()
    %130 = vector.shape_cast %129 : vector<1x8x8xf32> to vector<8x8xf32>
    %c0_40 = arith.constant 0 : index
    %c24 = arith.constant 24 : index
    %131 = vector.load %arg17[%c0_40, %c24] : memref<8x32xf32, #tpu.memory_space<vmem>>, vector<8x8xf32>
    tpu.vector_store %arg17[%c0_40, %c24], %130 {strides = array<i32>} : memref<8x32xf32, #tpu.memory_space<vmem>>, vector<8x8xf32>,
    %c0_41 = arith.constant 0 : index
    %c0_42 = arith.constant 0 : index
    %132 = vector.load %arg17[%c0_41, %c0_42] : memref<8x32xf32, #tpu.memory_space<vmem>>, vector<8x32xf32>
    %133 = arith.truncf %132 : vector<8x32xf32> to vector<8x32xbf16>
    %c0_43 = arith.constant 0 : index
    %c0_44 = arith.constant 0 : index
    %134 = vector.load %arg8[%c0_43, %c0_44] : memref<32x32xbf16, #tpu.memory_space<vmem>>, vector<32x32xbf16>
    %cst_45 = arith.constant dense<0.000000e+00> : vector<8x32xf32>
    %135 = tpu.matmul %133, %134, %cst_45 {dimension_numbers = #tpu.dot_dimension_numbers<[1], [0], [0], [1], [0, 0, 1, 1], [], []>} : vector<8x32xbf16>, vector<32x32xbf16>, vector<8x32xf32> -> vector<8x32xf32>
    %c0_46 = arith.constant 0 : index
    %c0_47 = arith.constant 0 : index
    %136 = vector.load %arg9[%c0_46, %c0_47] : memref<1x32xf32, #tpu.memory_space<vmem>>, vector<1x32xf32>
    %137 = vector.shape_cast %136 : vector<1x32xf32> to vector<32xf32>
    %138 = vector.shape_cast %137 : vector<32xf32> to vector<1x32xf32>
    %139 = vector.broadcast %138 : vector<1x32xf32> to vector<8x32xf32>
    %140 = arith.addf %135, %139 : vector<8x32xf32>
    %141 = arith.addf %1, %140 : vector<8x32xf32>
    %c0_48 = arith.constant 0 : index
    %c0_49 = arith.constant 0 : index
    %142 = vector.load %arg10[%c0_48, %c0_49] : memref<1x32xf32, #tpu.memory_space<vmem>>, vector<1x32xf32>
    %143 = vector.shape_cast %142 : vector<1x32xf32> to vector<32xf32>
    %c0_50 = arith.constant 0 : index
    %c0_51 = arith.constant 0 : index
    %144 = vector.load %arg11[%c0_50, %c0_51] : memref<1x32xf32, #tpu.memory_space<vmem>>, vector<1x32xf32>
    %145 = vector.shape_cast %144 : vector<1x32xf32> to vector<32xf32>
    %cst_52 = arith.constant dense<0.000000e+00> : vector<8xf32>
    %146 = vector.multi_reduction <add>, %141, %cst_52 [1] : vector<8x32xf32> to vector<8xf32>
    %147 = vector.shape_cast %146 : vector<8xf32> to vector<8x1xf32>
    %cst_53 = arith.constant 3.200000e+01 : f32
    %148 = vector.broadcast %cst_53 : f32 to vector<8x1xf32>
    %149 = arith.divf %147, %148 : vector<8x1xf32>
    %150 = vector.broadcast %149 : vector<8x1xf32> to vector<8x32xf32>
    %151 = arith.subf %141, %150 : vector<8x32xf32>
    %152 = arith.mulf %151, %151 : vector<8x32xf32>
    %cst_54 = arith.constant dense<0.000000e+00> : vector<8xf32>
    %153 = vector.multi_reduction <add>, %152, %cst_54 [1] : vector<8x32xf32> to vector<8xf32>
    %154 = vector.shape_cast %153 : vector<8xf32> to vector<8x1xf32>
    %cst_55 = arith.constant 3.200000e+01 : f32
    %155 = vector.broadcast %cst_55 : f32 to vector<8x1xf32>
    %156 = arith.divf %154, %155 : vector<8x1xf32>
    %157 = vector.broadcast %149 : vector<8x1xf32> to vector<8x32xf32>
    %158 = arith.subf %141, %157 : vector<8x32xf32>
    %cst_56 = arith.constant 9.99999974E-6 : f32
    %159 = vector.broadcast %cst_56 : f32 to vector<8x1xf32>
    %160 = arith.addf %156, %159 : vector<8x1xf32>
    %161 = math.rsqrt %160 : vector<8x1xf32>
    %162 = vector.broadcast %161 : vector<8x1xf32> to vector<8x32xf32>
    %163 = arith.mulf %158, %162 : vector<8x32xf32>
    %164 = vector.shape_cast %143 : vector<32xf32> to vector<1x32xf32>
    %165 = vector.broadcast %164 : vector<1x32xf32> to vector<8x32xf32>
    %166 = arith.mulf %163, %165 : vector<8x32xf32>
    %167 = vector.shape_cast %145 : vector<32xf32> to vector<1x32xf32>
    %168 = vector.broadcast %167 : vector<1x32xf32> to vector<8x32xf32>
    %169 = arith.addf %166, %168 : vector<8x32xf32>
    %170 = arith.truncf %169 : vector<8x32xf32> to vector<8x32xbf16>
    %c0_57 = arith.constant 0 : index
    %c0_58 = arith.constant 0 : index
    %171 = vector.load %arg12[%c0_57, %c0_58] : memref<32x64xbf16, #tpu.memory_space<vmem>>, vector<32x64xbf16>
    %cst_59 = arith.constant dense<0.000000e+00> : vector<8x64xf32>
    %172 = tpu.matmul %170, %171, %cst_59 {dimension_numbers = #tpu.dot_dimension_numbers<[1], [0], [0], [1], [0, 0, 1, 1], [], []>} : vector<8x32xbf16>, vector<32x64xbf16>, vector<8x64xf32> -> vector<8x64xf32>
    %c0_60 = arith.constant 0 : index
    %c0_61 = arith.constant 0 : index
    %173 = vector.load %arg13[%c0_60, %c0_61] : memref<1x64xf32, #tpu.memory_space<vmem>>, vector<1x64xf32>
    %174 = vector.shape_cast %173 : vector<1x64xf32> to vector<64xf32>
    %175 = vector.shape_cast %174 : vector<64xf32> to vector<1x64xf32>
    %176 = vector.broadcast %175 : vector<1x64xf32> to vector<8x64xf32>
    %177 = arith.addf %172, %176 : vector<8x64xf32>
    %cst_62 = arith.constant 0.000000e+00 : f32
    %178 = vector.broadcast %cst_62 : f32 to vector<8x64xf32>
    %179 = arith.maximumf %177, %178 : vector<8x64xf32>
    %180 = arith.truncf %179 : vector<8x64xf32> to vector<8x64xbf16>
    %c0_63 = arith.constant 0 : index
    %c0_64 = arith.constant 0 : index
    %181 = vector.load %arg14[%c0_63, %c0_64] : memref<64x32xbf16, #tpu.memory_space<vmem>>, vector<64x32xbf16>
    %cst_65 = arith.constant dense<0.000000e+00> : vector<8x32xf32>
    %182 = tpu.matmul %180, %181, %cst_65 {dimension_numbers = #tpu.dot_dimension_numbers<[1], [0], [0], [1], [0, 0, 1, 1], [], []>} : vector<8x64xbf16>, vector<64x32xbf16>, vector<8x32xf32> -> vector<8x32xf32>
    %c0_66 = arith.constant 0 : index
    %c0_67 = arith.constant 0 : index
    %183 = vector.load %arg15[%c0_66, %c0_67] : memref<1x32xf32, #tpu.memory_space<vmem>>, vector<1x32xf32>
    %184 = vector.shape_cast %183 : vector<1x32xf32> to vector<32xf32>
    %185 = vector.shape_cast %184 : vector<32xf32> to vector<1x32xf32>
    %186 = vector.broadcast %185 : vector<1x32xf32> to vector<8x32xf32>
    %187 = arith.addf %182, %186 : vector<8x32xf32>
    %188 = arith.addf %141, %187 : vector<8x32xf32>
    %189 = vector.shape_cast %188 : vector<8x32xf32> to vector<1x8x32xf32>
    %c0_68 = arith.constant 0 : index
    %c0_69 = arith.constant 0 : index
    %c0_70 = arith.constant 0 : index
    %190 = vector.load %arg16[%c0_68, %c0_69, %c0_70] : memref<1x8x32xf32, #tpu.memory_space<vmem>>, vector<1x8x32xf32>
    tpu.vector_store %arg16[%c0_68, %c0_69, %c0_70], %189 {strides = array<i32>} : memref<1x8x32xf32, #tpu.memory_space<vmem>>, vector<1x8x32xf32>,
    return
  }
  func.func @transform_0(%arg0: i32) -> (i32, i32, i32) {
    %c0_i32 = arith.constant 0 : i32
    %c0_i32_0 = arith.constant 0 : i32
    %c0_i32_1 = arith.constant 0 : i32
    return %arg0, %c0_i32, %c0_i32_0 : i32, i32, i32
  }
  func.func @transform_1(%arg0: i32) -> (i32, i32) {
    %c0_i32 = arith.constant 0 : i32
    %c0_i32_0 = arith.constant 0 : i32
    %c0_i32_1 = arith.constant 0 : i32
    return %c0_i32, %c0_i32_0 : i32, i32
  }
  func.func @transform_2(%arg0: i32) -> (i32, i32, i32) {
    %c0_i32 = arith.constant 0 : i32
    %c0_i32_0 = arith.constant 0 : i32
    %c0_i32_1 = arith.constant 0 : i32
    return %arg0, %c0_i32, %c0_i32_0 : i32, i32, i32
  }
  func.func @transform_3(%arg0: i32) -> (i32, i32) {
    %c0_i32 = arith.constant 0 : i32
    %c0_i32_0 = arith.constant 0 : i32
    %c0_i32_1 = arith.constant 0 : i32
    return %c0_i32, %c0_i32_0 : i32, i32
  }
  func.func @transform_4(%arg0: i32) -> (i32, i32) {
    %c0_i32 = arith.constant 0 : i32
    %c0_i32_0 = arith.constant 0 : i32
    %c0_i32_1 = arith.constant 0 : i32
    return %c0_i32, %c0_i32_0 : i32, i32
  }
  func.func @transform_5(%arg0: i32) -> (i32, i32) {
    %c0_i32 = arith.constant 0 : i32
    %c0_i32_0 = arith.constant 0 : i32
    %c0_i32_1 = arith.constant 0 : i32
    return %c0_i32, %c0_i32_0 : i32, i32
  }
  func.func @transform_6(%arg0: i32) -> (i32, i32) {
    %c0_i32 = arith.constant 0 : i32
    %c0_i32_0 = arith.constant 0 : i32
    %c0_i32_1 = arith.constant 0 : i32
    return %c0_i32, %c0_i32_0 : i32, i32
  }
  func.func @transform_7(%arg0: i32) -> (i32, i32) {
    %c0_i32 = arith.constant 0 : i32
    %c0_i32_0 = arith.constant 0 : i32
    %c0_i32_1 = arith.constant 0 : i32
    return %c0_i32, %c0_i32_0 : i32, i32
  }
  func.func @transform_8(%arg0: i32) -> (i32, i32) {
    %c0_i32 = arith.constant 0 : i32
    %c0_i32_0 = arith.constant 0 : i32
    %c0_i32_1 = arith.constant 0 : i32
    return %c0_i32, %c0_i32_0 : i32, i32
  }
  func.func @transform_9(%arg0: i32) -> (i32, i32) {
    %c0_i32 = arith.constant 0 : i32
    %c0_i32_0 = arith.constant 0 : i32
    %c0_i32_1 = arith.constant 0 : i32
    return %c0_i32, %c0_i32_0 : i32, i32
  }
  func.func @transform_10(%arg0: i32) -> (i32, i32) {
    %c0_i32 = arith.constant 0 : i32
    %c0_i32_0 = arith.constant 0 : i32
    %c0_i32_1 = arith.constant 0 : i32
    return %c0_i32, %c0_i32_0 : i32, i32
  }
  func.func @transform_11(%arg0: i32) -> (i32, i32) {
    %c0_i32 = arith.constant 0 : i32
    %c0_i32_0 = arith.constant 0 : i32
    %c0_i32_1 = arith.constant 0 : i32
    return %c0_i32, %c0_i32_0 : i32, i32
  }
  func.func @transform_12(%arg0: i32) -> (i32, i32) {
    %c0_i32 = arith.constant 0 : i32
    %c0_i32_0 = arith.constant 0 : i32
    %c0_i32_1 = arith.constant 0 : i32
    return %c0_i32, %c0_i32_0 : i32, i32
  }
  func.func @transform_13(%arg0: i32) -> (i32, i32) {
    %c0_i32 = arith.constant 0 : i32
    %c0_i32_0 = arith.constant 0 : i32
    %c0_i32_1 = arith.constant 0 : i32
    return %c0_i32, %c0_i32_0 : i32, i32
  }
  func.func @transform_14(%arg0: i32) -> (i32, i32) {
    %c0_i32 = arith.constant 0 : i32
    %c0_i32_0 = arith.constant 0 : i32
    %c0_i32_1 = arith.constant 0 : i32
    return %c0_i32, %c0_i32_0 : i32, i32
  }
  func.func @transform_15(%arg0: i32) -> (i32, i32, i32) {
    %c0_i32 = arith.constant 0 : i32
    %c0_i32_0 = arith.constant 0 : i32
    %c0_i32_1 = arith.constant 0 : i32
    return %arg0, %c0_i32, %c0_i32_0 : i32, i32, i32
  }
}

module attributes {stable_mosaic.version = 11 : i64} {
  func.func @proj_kernel(%arg0: i32, %arg1: i32, %arg2: memref<1x8x32xbf16, #tpu.memory_space<vmem>>, %arg3: memref<32x20xbf16, #tpu.memory_space<vmem>>, %arg4: memref<1x20xf32, #tpu.memory_space<vmem>>, %arg5: memref<1x8x20xf32, #tpu.memory_space<vmem>>) attributes {dimension_semantics = [#tpu.dimension_semantics<parallel>, #tpu.dimension_semantics<parallel>], iteration_bounds = array<i64: 1, 2>, scalar_prefetch = 0 : i64, scratch_operands = 0 : i64, tpu.core_type = #tpu.core_type<tc>, window_params = [{transform_indices = @transform_0, window_bounds = array<i64: 1, 8, 32>}, {transform_indices = @transform_1, window_bounds = array<i64: 32, 20>}, {transform_indices = @transform_2, window_bounds = array<i64: 1, 20>}, {transform_indices = @transform_3, window_bounds = array<i64: 1, 8, 20>}]} {
    %c0 = arith.constant 0 : index
    %c0_0 = arith.constant 0 : index
    %c0_1 = arith.constant 0 : index
    %0 = vector.load %arg2[%c0, %c0_0, %c0_1] : memref<1x8x32xbf16, #tpu.memory_space<vmem>>, vector<1x8x32xbf16>
    %1 = vector.shape_cast %0 : vector<1x8x32xbf16> to vector<8x32xbf16>
    %c0_2 = arith.constant 0 : index
    %c0_3 = arith.constant 0 : index
    %2 = vector.load %arg3[%c0_2, %c0_3] : memref<32x20xbf16, #tpu.memory_space<vmem>>, vector<32x20xbf16>
    %cst = arith.constant dense<0.000000e+00> : vector<8x20xf32>
    %3 = tpu.matmul %1, %2, %cst {dimension_numbers = #tpu.dot_dimension_numbers<[1], [0], [0], [1], [0, 0, 1, 1], [], []>} : vector<8x32xbf16>, vector<32x20xbf16>, vector<8x20xf32> -> vector<8x20xf32>
    %c0_4 = arith.constant 0 : index
    %c0_5 = arith.constant 0 : index
    %4 = vector.load %arg4[%c0_4, %c0_5] : memref<1x20xf32, #tpu.memory_space<vmem>>, vector<1x20xf32>
    %5 = vector.shape_cast %4 : vector<1x20xf32> to vector<20xf32>
    %6 = vector.shape_cast %5 : vector<20xf32> to vector<1x20xf32>
    %7 = vector.broadcast %6 : vector<1x20xf32> to vector<8x20xf32>
    %8 = arith.addf %3, %7 : vector<8x20xf32>
    %9 = vector.shape_cast %8 : vector<8x20xf32> to vector<1x8x20xf32>
    %c0_6 = arith.constant 0 : index
    %c0_7 = arith.constant 0 : index
    %c0_8 = arith.constant 0 : index
    %10 = vector.load %arg5[%c0_6, %c0_7, %c0_8] : memref<1x8x20xf32, #tpu.memory_space<vmem>>, vector<1x8x20xf32>
    tpu.vector_store %arg5[%c0_6, %c0_7, %c0_8], %9 {strides = array<i32>} : memref<1x8x20xf32, #tpu.memory_space<vmem>>, vector<1x8x20xf32>,
    return
  }
  func.func @transform_0(%arg0: i32, %arg1: i32) -> (i32, i32, i32) {
    %c0_i32 = arith.constant 0 : i32
    %c0_i32_0 = arith.constant 0 : i32
    %c0_i32_1 = arith.constant 0 : i32
    return %arg1, %c0_i32, %c0_i32_0 : i32, i32, i32
  }
  func.func @transform_1(%arg0: i32, %arg1: i32) -> (i32, i32) {
    %c0_i32 = arith.constant 0 : i32
    %c0_i32_0 = arith.constant 0 : i32
    return %c0_i32, %arg0 : i32, i32
  }
  func.func @transform_2(%arg0: i32, %arg1: i32) -> (i32, i32) {
    %c0_i32 = arith.constant 0 : i32
    %c0_i32_0 = arith.constant 0 : i32
    return %c0_i32, %arg0 : i32, i32
  }
  func.func @transform_3(%arg0: i32, %arg1: i32) -> (i32, i32, i32) {
    %c0_i32 = arith.constant 0 : i32
    %c0_i32_0 = arith.constant 0 : i32
    return %arg1, %c0_i32, %arg0 : i32, i32, i32
  }
}

</mosaic_0001>

<llo_original>
// kernel: gpt2_forward.5
$region0: #{gpt2_forward.5}
  #allocation0 [shape = 'u32[]', space=smem, size = 0x4, offset = 0x4, fixed_abs, tag = 'smem constant byte address 0x4 - core index']
  #allocation1 [shape = 'u32[144,128]{1,0:T(1,128)}', space=vmem, size = 0x12000, scoped, tag = 'internal scratch']
  %s0 = inlined_call_operand.vmem [shape: bf16[2,8,32], index: 0, kind: input, shape index: {}]
  %s1 = inlined_call_operand.vmem [shape: bf16[32,20], index: 1, kind: input, shape index: {}]
  %s2 = inlined_call_operand.vmem [shape: f32[1,20], index: 2, kind: input, shape index: {}]
  %s3 = inlined_call_operand.vmem [shape: f32[2,8,20], index: 3, kind: output, shape index: {}]
  %s4 = sld [smem:[#allocation0]]
  $region45: #{gpt2_forward.5} parent=0
    _
  %s6 = ssub.s32 1, %s4
  %s7 = scalar_select 0, %s6, %s4
  loop: start=0, step=1, limit=4
  $region2: #{gpt2_forward.5} parent=0 // loop_pre_header
    _
  $region3: #{gpt2_forward.5} parent=0 // loop_header
    %s9 = sphi 0, %s13
    %p10 = scmp.ge.s32.totalorder %s9, 4
    %s16 = sphi 0, %s28
    %s17 = sphi 0, %s24
    %s18 = sphi 0, %s16
    %s19 = sphi 0, %s17
    %s20 = sphi 0, %s18
    %s21 = sphi 0, %s19
    %s31 = sphi 0, %s33
    %s34 = sphi 0, %s31
    %s35 = sphi 0, %s34
    %s51 = sphi 0, %s35
    %s57 = sphi 0, %s59
    %s60 = sphi 0, %s57
    %s61 = sphi 0, %s60
    %s77 = sphi 0, %s61
    %s83 = sphi 0, %s85
    %s86 = sphi 0, %s83
    %s87 = sphi 0, %s86
    %s103 = sphi 0, %s87
    %s111 = sphi 0, %s113
    %s114 = sphi 0, %s111
    %s115 = sphi 0, %s114
    %s131 = sphi 0, %s115
  $region4: #{gpt2_forward.5} parent=0 // loop_header_branch
    %12 = sbr.rel (%p10) target = $region8
  $region5: #{gpt2_forward.5} parent=0 // loop_body
    %s14 = ssub.s32 %s9, 1
    %s15 = ssub.s32 %s9, 2
    %s22 = sadd.s32 1, %s17
    %p23 = scmp.ge.s32.totalorder %s22, 2
    %s24 = scalar_select %p23, 0, %s22
    %s25 = sadd.s32 1, %s16
    %s26 = scalar_select %p23, %s25, %s16
    %p27 = scmp.ge.s32.totalorder %s26, 1
    %s28 = scalar_select %p27, 0, %s26
    %s29 = ssub.s32 %s17, %s24
    %p30 = scmp.eq.s32.totalorder %s29, 0
    %s32 = sadd.s32 %s31, 1
    %s33 = scalar_select %p30, %s31, %s32
    %p36 = pneg %p30
    %p37 = scmp.eq.s32.totalorder %s9, 1
    %p38 = por %p36, %p37
    %p39 = scmp.ne.s32.totalorder %s31, %s34
    %p40 = scmp.eq.s32.totalorder %s9, 0
    %p41 = por %p39, %p40
    %p42 = scmp.ne.s32.totalorder %s31, %s34
    %p43 = scmp.eq.s32.totalorder %s14, 1
    %p44 = por %p42, %p43
    %p45 = scmp.ne.s32.totalorder %s34, %s35
    %p46 = scmp.eq.s32.totalorder %s14, 0
    %p47 = por %p45, %p46
    %p48 = scmp.ne.s32.totalorder %s34, %s35
    %p49 = scmp.eq.s32.totalorder %s15, 1
    %p50 = por %p48, %p49
    %p52 = scmp.ne.s32.totalorder %s35, %s51
    %p53 = scmp.eq.s32.totalorder %s15, 0
    %p54 = por %p52, %p53
    %s55 = ssub.s32 %s16, %s28
    %p56 = scmp.eq.s32.totalorder %s55, 0
    %s58 = sadd.s32 %s57, 1
    %s59 = scalar_select %p56, %s57, %s58
    %p62 = pneg %p56
    %p63 = scmp.eq.s32.totalorder %s9, 1
    %p64 = por %p62, %p63
    %p65 = scmp.ne.s32.totalorder %s57, %s60
    %p66 = scmp.eq.s32.totalorder %s9, 0
    %p67 = por %p65, %p66
    %p68 = scmp.ne.s32.totalorder %s57, %s60
    %p69 = scmp.eq.s32.totalorder %s14, 1
    %p70 = por %p68, %p69
    %p71 = scmp.ne.s32.totalorder %s60, %s61
    %p72 = scmp.eq.s32.totalorder %s14, 0
    %p73 = por %p71, %p72
    %p74 = scmp.ne.s32.totalorder %s60, %s61
    %p75 = scmp.eq.s32.totalorder %s15, 1
    %p76 = por %p74, %p75
    %p78 = scmp.ne.s32.totalorder %s61, %s77
    %p79 = scmp.eq.s32.totalorder %s15, 0
    %p80 = por %p78, %p79
    %s81 = ssub.s32 %s16, %s28
    %p82 = scmp.eq.s32.totalorder %s81, 0
    %s84 = sadd.s32 %s83, 1
    %s85 = scalar_select %p82, %s83, %s84
    %p88 = pneg %p82
    %p89 = scmp.eq.s32.totalorder %s9, 1
    %p90 = por %p88, %p89
    %p91 = scmp.ne.s32.totalorder %s83, %s86
    %p92 = scmp.eq.s32.totalorder %s9, 0
    %p93 = por %p91, %p92
    %p94 = scmp.ne.s32.totalorder %s83, %s86
    %p95 = scmp.eq.s32.totalorder %s14, 1
    %p96 = por %p94, %p95
    %p97 = scmp.ne.s32.totalorder %s86, %s87
    %p98 = scmp.eq.s32.totalorder %s14, 0
    %p99 = por %p97, %p98
    %p100 = scmp.ne.s32.totalorder %s86, %s87
    %p101 = scmp.eq.s32.totalorder %s15, 1
    %p102 = por %p100, %p101
    %p104 = scmp.ne.s32.totalorder %s87, %s103
    %p105 = scmp.eq.s32.totalorder %s15, 0
    %p106 = por %p104, %p105
    %s107 = ssub.s32 %s17, %s24
    %s108 = ssub.s32 %s16, %s28
    %s109 = sor.u32 %s107, %s108
    %p110 = scmp.eq.s32.totalorder %s109, 0
    %s112 = sadd.s32 %s111, 1
    %s113 = scalar_select %p110, %s111, %s112
    %p116 = pneg %p110
    %p117 = scmp.eq.s32.totalorder %s9, 1
    %p118 = por %p116, %p117
    %p119 = scmp.ne.s32.totalorder %s111, %s114
    %p120 = scmp.eq.s32.totalorder %s9, 0
    %p121 = por %p119, %p120
    %p122 = scmp.ne.s32.totalorder %s111, %s114
    %p123 = scmp.eq.s32.totalorder %s14, 1
    %p124 = por %p122, %p123
    %p125 = scmp.ne.s32.totalorder %s114, %s115
    %p126 = scmp.eq.s32.totalorder %s14, 0
    %p127 = por %p125, %p126
    %p128 = scmp.ne.s32.totalorder %s114, %s115
    %p129 = scmp.eq.s32.totalorder %s15, 1
    %p130 = por %p128, %p129
    %p132 = scmp.ne.s32.totalorder %s115, %s131
    %p133 = scmp.eq.s32.totalorder %s15, 0
    %p134 = por %p132, %p133
    %p135 = scmp.le.s32.totalorder 1, %s9
    %p136 = scmp.lt.s32.totalorder %s9, 3
    %p137 = pnand %p135, %p136
    %p138 = pneg %p137
    // Predicated region
    $region9: #{gpt2_forward.5} parent=5 // pred_check
      _
    $region10: #{gpt2_forward.5} parent=5 // pred_check_branch
      %140 = sbr.rel (%p137) target = $region12
    $region11: #{gpt2_forward.5} parent=5 // pred_region
      %s141 = ssub.s32 %s9, 1
      // Predicated region
      $region13: #{gpt2_forward.5} parent=11 // pred_check
        %p142 = pneg %p73
      $region14: #{gpt2_forward.5} parent=11 // pred_check_branch
        %144 = sbr.rel (%p142) target = $region16
      $region15: #{gpt2_forward.5} parent=11 // pred_region
        %p145 = scmp.lt.s32.totalorder %s18, 0
        %s146 = scalar_select %p145, %s18, 0
        %s147 = smul.addr %s146, 4
        %s148 = scalar_lea.vmem %s1, %s147
      $region16: #{gpt2_forward.5} parent=11 // pred_fallthru
        _
      // Predicated region
      $region17: #{gpt2_forward.5} parent=11 // pred_check
        %p149 = pneg %p99
      $region18: #{gpt2_forward.5} parent=11 // pred_check_branch
        %151 = sbr.rel (%p149) target = $region20
      $region19: #{gpt2_forward.5} parent=11 // pred_region
        %p152 = scmp.lt.s32.totalorder %s18, 0
        %s153 = scalar_select %p152, %s18, 0
        %s154 = scalar_lea.vmem %s2, %s153
      $region20: #{gpt2_forward.5} parent=11 // pred_fallthru
        _
    $region12: #{gpt2_forward.5} parent=5 // pred_fallthru
      _
    %p155 = scmp.lt.s32.totalorder %s9, 2
    // Predicated region
    $region21: #{gpt2_forward.5} parent=5 // pred_check
      %p156 = pneg %p155
    $region22: #{gpt2_forward.5} parent=5 // pred_check_branch
      %158 = sbr.rel (%p156) target = $region24
    $region23: #{gpt2_forward.5} parent=5 // pred_region
      // Predicated region
      $region25: #{gpt2_forward.5} parent=23 // pred_check
        %p159 = pneg %p41
      $region26: #{gpt2_forward.5} parent=23 // pred_check_branch
        %161 = sbr.rel (%p159) target = $region28
      $region27: #{gpt2_forward.5} parent=23 // pred_region
        %p162 = scmp.lt.s32.totalorder %s17, 1
        %s163 = scalar_select %p162, %s17, 1
        %s164 = smul.addr %s163, 4
        %s165 = scalar_lea.vmem %s0, %s164
      $region28: #{gpt2_forward.5} parent=23 // pred_fallthru
        _
    $region24: #{gpt2_forward.5} parent=5 // pred_fallthru
      _
    %p166 = scmp.le.s32.totalorder 1, %s9
    %p167 = scmp.lt.s32.totalorder %s9, 3
    %p168 = pnand %p166, %p167
    %p169 = pneg %p168
    // Predicated region
    $region29: #{gpt2_forward.5} parent=5 // pred_check
      _
    $region30: #{gpt2_forward.5} parent=5 // pred_check_branch
      %171 = sbr.rel (%p168) target = $region32
    $region31: #{gpt2_forward.5} parent=5 // pred_region
      %s172 = ssub.s32 %s9, 1
      %p173 = scmp.lt.s32.totalorder %s19, 1
      %s174 = scalar_select %p173, %s19, 1
      %s175 = smul.addr %s174, 4
      %s176 = scalar_lea.vmem %s0, %s175
      %p177 = pneg %p47
      %p178 = pneg %p44
      %p179 = scmp.lt.s32.totalorder %s18, 0
      %s180 = scalar_select %p179, %s18, 0
      %s181 = smul.addr %s180, 4
      %s182 = scalar_lea.vmem %s1, %s181
      %p183 = pneg %p73
      %p184 = pneg %p70
      %p185 = scmp.lt.s32.totalorder %s18, 0
      %s186 = scalar_select %p185, %s18, 0
      %s187 = scalar_lea.vmem %s2, %s186
      %p188 = pneg %p99
      %p189 = pneg %p96
      %p190 = pneg %p127
      %p191 = pneg %p124
      %p192 = scmp.lt.s32.totalorder %s19, 1
      %s193 = scalar_select %p192, %s19, 1
      %p194 = scmp.lt.s32.totalorder %s18, 0
      %s195 = scalar_select %p194, %s18, 0
      %s196 = sadd.s32 %s195, %s193
      %s197 = smul.addr %s196, 8
      %s198 = scalar_lea.vmem %s3, %s197
      %p199 = scmp.lt.s32.totalorder %s19, 1
      %s200 = scalar_select %p199, %s19, 1
      %s201 = smul.addr %s200, 4
      %s202 = scalar_lea.vmem %s0, %s201
      %p203 = scmp.lt.s32.totalorder %s18, 0
      %s204 = scalar_select %p203, %s18, 0
      %s205 = smul.addr %s204, 4
      %s206 = scalar_lea.vmem %s1, %s205
      %p207 = scmp.lt.s32.totalorder %s18, 0
      %s208 = scalar_select %p207, %s18, 0
      %s209 = scalar_lea.vmem %s2, %s208
      %p210 = scmp.lt.s32.totalorder %s19, 1
      %s211 = scalar_select %p210, %s19, 1
      %p212 = scmp.lt.s32.totalorder %s18, 0
      %s213 = scalar_select %p212, %s18, 0
      %s214 = sadd.s32 %s213, %s211
      %s215 = smul.addr %s214, 8
      %s216 = scalar_lea.vmem %s3, %s215
      %v218 = vld [vmem:[%s202] sm:$0xf]
      %v219 = vld [vmem:[%s206] sm:$0xf]
      %v220 = vld [vmem:[%s206 + $0x4] sm:$0xf]
      %v221 = vld [vmem:[%s206 + $0x8] sm:$0xf]
      %v222 = vld [vmem:[%s206 + $0xc] sm:$0xf]
      %v223 = vld [vmem:[%s209] sm:$0x1]
      %v225 = vlaneseq
      %v226 = vshrl.u32 %v225, 7
      %v227 = vsub.s32 0, %v226
      %v228 = vrot.slane %v223, %v227
      %v234 = vunpack.c.l.b16 %v219
      %v235 = vunpack.c.l.b16 %v220
      %v236 = vunpack.c.l.b16 %v221
      %v237 = vunpack.c.l.b16 %v222
      %v238 = vpack.c.b16 %v235, %v234
      %v239 = vpack.c.b16 %v237, %v236
      %vm242 = vcmask 261120
      %v244 = vsel %vm242, %v218, 0
      %246 = vmatprep.subr.bf16.mxu0 0
      %247 = vmatpush1.bf16.msra.mxu0 0
      %248 = vmatprep.subr.bf16.mxu0 0
      %249 = vmatpush1.bf16.msra.mxu0 0
      %250 = vmatprep.subr.bf16.mxu0 0
      %251 = vmatpush1.bf16.msra.mxu0 0
      %252 = vmatprep.subr.bf16.mxu0 0
      %253 = vmatpush1.bf16.msra.mxu0 0
      %254 = vmatprep.subr.bf16.mxu0 0
      %255 = vmatpush1.bf16.msra.mxu0 0
      %256 = vmatprep.subr.bf16.mxu0 0
      %257 = vmatpush1.bf16.msra.mxu0 0
      %258 = vmatprep.subr.bf16.mxu0 0
      %259 = vmatpush1.bf16.msra.mxu0 %v239
      %260 = vmatprep.subr.bf16.mxu0 0
      %261 = vmatpush1.bf16.msra.mxu0 %v238
      %262 = vmatprep.subr.bf16.mxu0 0
      %263 = vmatpush2.bf16.msra.mxu0 0
      %264 = vmatprep.subr.bf16.mxu0 0
      %265 = vmatpush2.bf16.msra.mxu0 0
      %266 = vmatprep.subr.bf16.mxu0 0
      %267 = vmatpush2.bf16.msra.mxu0 0
      %268 = vmatprep.subr.bf16.mxu0 0
      %269 = vmatpush2.bf16.msra.mxu0 0
      %270 = vmatprep.subr.bf16.mxu0 0
      %271 = vmatpush2.bf16.msra.mxu0 0
      %272 = vmatprep.subr.bf16.mxu0 0
      %273 = vmatpush2.bf16.msra.mxu0 0
      %274 = vmatprep.subr.bf16.mxu0 0
      %275 = vmatpush2.bf16.msra.mxu0 0
      %276 = vmatprep.subr.bf16.mxu0 0
      %277 = vmatpush2.bf16.msra.mxu0 0
      %278 = vmatprep.mubr.bf16.mxu0 0
      %279 = vmatmul.mubr.bf16.gmra.mxu0 %v244
      %v280 = vpop.f32.mrf.mxu0
      %v281 = vadd.f32 %v228, %v280
      %v282 = vpop.f32.mrf.mxu0
      %v283 = vpop.f32.mrf.mxu0
      %v284 = vpop.f32.mrf.mxu0
      %285 = vdwg.mxu0
      %vm286 = vcmask 162816
      %287 = vst.msk [vmem:[%s216] sm:$0xff] %vm286, %v281
      %p288 = scmp.lt.s32.totalorder %s19, 1
      %s289 = scalar_select %p288, %s19, 1
      %p290 = scmp.lt.s32.totalorder %s18, 0
      %s291 = scalar_select %p290, %s18, 0
      %s292 = sadd.s32 %s291, %s289
      %s293 = smul.addr %s292, 8
      %s294 = scalar_lea.vmem %s3, %s293
      // Predicated region
      $region33: #{gpt2_forward.5} parent=31 // pred_check
        %p295 = pneg %p124
      $region34: #{gpt2_forward.5} parent=31 // pred_check_branch
        %297 = sbr.rel (%p295) target = $region36
      $region35: #{gpt2_forward.5} parent=31 // pred_region
        _
      $region36: #{gpt2_forward.5} parent=31 // pred_fallthru
        _
    $region32: #{gpt2_forward.5} parent=5 // pred_fallthru
      _
    %p298 = scmp.le.s32.totalorder 2, %s9
    // Predicated region
    $region37: #{gpt2_forward.5} parent=5 // pred_check
      %p299 = pneg %p298
    $region38: #{gpt2_forward.5} parent=5 // pred_check_branch
      %301 = sbr.rel (%p299) target = $region40
    $region39: #{gpt2_forward.5} parent=5 // pred_region
      %s302 = ssub.s32 %s9, 2
      // Predicated region
      $region41: #{gpt2_forward.5} parent=39 // pred_check
        %p303 = pneg %p130
      $region42: #{gpt2_forward.5} parent=39 // pred_check_branch
        %305 = sbr.rel (%p303) target = $region44
      $region43: #{gpt2_forward.5} parent=39 // pred_region
        %p306 = scmp.lt.s32.totalorder %s21, 1
        %s307 = scalar_select %p306, %s21, 1
        %p308 = scmp.lt.s32.totalorder %s20, 0
        %s309 = scalar_select %p308, %s20, 0
        %s310 = sadd.s32 %s309, %s307
        %s311 = smul.addr %s310, 8
        %s312 = scalar_lea.vmem %s3, %s311
      $region44: #{gpt2_forward.5} parent=39 // pred_fallthru
        _
    $region40: #{gpt2_forward.5} parent=5 // pred_fallthru
      _
  $region6: #{gpt2_forward.5} parent=0 // loop_footer
    %s13 = sadd.s32 1, %s9
  $region7: #{gpt2_forward.5} parent=0 // loop_footer_branch
    %8 = sbr.rel target = $region3
  $region8: #{gpt2_forward.5} parent=0 // loop_exit
    _

// kernel: gpt2_forward.3
$region0: #{gpt2_forward.3}
  #allocation0 [shape = 'u32[]', space=smem, size = 0x4, offset = 0x4, fixed_abs, tag = 'smem constant byte address 0x4 - core index']
  #allocation1 [shape = 'u32[144,128]{1,0:T(1,128)}', space=vmem, size = 0x12000, scoped, tag = 'internal scratch']
  #allocation2 [shape = 'f32[8,32]{1,0:T(8,128)}', space=vmem, size = 0x1000, scoped, tag = 'scratch operand']
  %s0 = inlined_call_operand.vmem [shape: f32[2,8,32], index: 0, kind: input, shape index: {}]
  %s1 = inlined_call_operand.vmem [shape: f32[8,8], index: 1, kind: input, shape index: {}]
  %s2 = inlined_call_operand.vmem [shape: f32[2,1,8], index: 2, kind: input, shape index: {}]
  %s3 = inlined_call_operand.vmem [shape: f32[1,32], index: 3, kind: input, shape index: {}]
  %s4 = inlined_call_operand.vmem [shape: f32[1,32], index: 4, kind: input, shape index: {}]
  %s5 = inlined_call_operand.vmem [shape: bf16[32,96], index: 5, kind: input, shape index: {}]
  %s6 = inlined_call_operand.vmem [shape: f32[1,96], index: 6, kind: input, shape index: {}]
  %s7 = inlined_call_operand.vmem [shape: bf16[32,32], index: 7, kind: input, shape index: {}]
  %s8 = inlined_call_operand.vmem [shape: f32[1,32], index: 8, kind: input, shape index: {}]
  %s9 = inlined_call_operand.vmem [shape: f32[1,32], index: 9, kind: input, shape index: {}]
  %s10 = inlined_call_operand.vmem [shape: f32[1,32], index: 10, kind: input, shape index: {}]
  %s11 = inlined_call_operand.vmem [shape: bf16[32,64], index: 11, kind: input, shape index: {}]
  %s12 = inlined_call_operand.vmem [shape: f32[1,64], index: 12, kind: input, shape index: {}]
  %s13 = inlined_call_operand.vmem [shape: bf16[64,32], index: 13, kind: input, shape index: {}]
  %s14 = inlined_call_operand.vmem [shape: f32[1,32], index: 14, kind: input, shape index: {}]
  %s15 = inlined_call_operand.vmem [shape: f32[2,8,32], index: 15, kind: output, shape index: {}]
  %s16 = sld [smem:[#allocation0]]
  $region93: #{gpt2_forward.3} parent=0
    _
  %s18 = ssub.s32 1, %s16
  %s19 = scalar_select 0, %s18, %s16
  loop: start=0, step=1, limit=4
  $region2: #{gpt2_forward.3} parent=0 // loop_pre_header
    _
  $region3: #{gpt2_forward.3} parent=0 // loop_header
    %s21 = sphi 0, %s25
    %p22 = scmp.ge.s32.totalorder %s21, 4
    %s31 = sphi 0, %s33
    %s34 = sphi 0, %s31
    %s35 = sphi 0, %s34
    %s51 = sphi 0, %s35
    %s55 = sphi 0, %s55
    %s57 = sphi 0, %s55
    %s58 = sphi 0, %s57
    %s72 = sphi 0, %s58
    %s78 = sphi 0, %s80
    %s81 = sphi 0, %s78
    %s82 = sphi 0, %s81
    %s98 = sphi 0, %s82
    %s102 = sphi 0, %s102
    %s104 = sphi 0, %s102
    %s105 = sphi 0, %s104
    %s119 = sphi 0, %s105
    %s123 = sphi 0, %s123
    %s125 = sphi 0, %s123
    %s126 = sphi 0, %s125
    %s140 = sphi 0, %s126
    %s144 = sphi 0, %s144
    %s146 = sphi 0, %s144
    %s147 = sphi 0, %s146
    %s161 = sphi 0, %s147
    %s165 = sphi 0, %s165
    %s167 = sphi 0, %s165
    %s168 = sphi 0, %s167
    %s182 = sphi 0, %s168
    %s186 = sphi 0, %s186
    %s188 = sphi 0, %s186
    %s189 = sphi 0, %s188
    %s203 = sphi 0, %s189
    %s207 = sphi 0, %s207
    %s209 = sphi 0, %s207
    %s210 = sphi 0, %s209
    %s224 = sphi 0, %s210
    %s228 = sphi 0, %s228
    %s230 = sphi 0, %s228
    %s231 = sphi 0, %s230
    %s245 = sphi 0, %s231
    %s249 = sphi 0, %s249
    %s251 = sphi 0, %s249
    %s252 = sphi 0, %s251
    %s266 = sphi 0, %s252
    %s270 = sphi 0, %s270
    %s272 = sphi 0, %s270
    %s273 = sphi 0, %s272
    %s287 = sphi 0, %s273
    %s291 = sphi 0, %s291
    %s293 = sphi 0, %s291
    %s294 = sphi 0, %s293
    %s308 = sphi 0, %s294
    %s312 = sphi 0, %s312
    %s314 = sphi 0, %s312
    %s315 = sphi 0, %s314
    %s329 = sphi 0, %s315
    %s333 = sphi 0, %s333
    %s335 = sphi 0, %s333
    %s336 = sphi 0, %s335
    %s350 = sphi 0, %s336
    %s356 = sphi 0, %s358
    %s359 = sphi 0, %s356
    %s360 = sphi 0, %s359
    %s376 = sphi 0, %s360
  $region4: #{gpt2_forward.3} parent=0 // loop_header_branch
    %24 = sbr.rel (%p22) target = $region8
  $region5: #{gpt2_forward.3} parent=0 // loop_body
    %s26 = ssub.s32 %s21, 1
    %s27 = ssub.s32 %s21, 2
    %s28 = sadd.s32 %s21, 1
    %s29 = ssub.s32 %s21, %s28
    %p30 = scmp.eq.s32.totalorder %s29, 0
    %s32 = sadd.s32 %s31, 1
    %s33 = scalar_select %p30, %s31, %s32
    %p36 = pneg %p30
    %p37 = scmp.eq.s32.totalorder %s21, 1
    %p38 = por %p36, %p37
    %p39 = scmp.ne.s32.totalorder %s31, %s34
    %p40 = scmp.eq.s32.totalorder %s21, 0
    %p41 = por %p39, %p40
    %p42 = scmp.ne.s32.totalorder %s31, %s34
    %p43 = scmp.eq.s32.totalorder %s26, 1
    %p44 = por %p42, %p43
    %p45 = scmp.ne.s32.totalorder %s34, %s35
    %p46 = scmp.eq.s32.totalorder %s26, 0
    %p47 = por %p45, %p46
    %p48 = scmp.ne.s32.totalorder %s34, %s35
    %p49 = scmp.eq.s32.totalorder %s27, 1
    %p50 = por %p48, %p49
    %p52 = scmp.ne.s32.totalorder %s35, %s51
    %p53 = scmp.eq.s32.totalorder %s27, 0
    %p54 = por %p52, %p53
    %s56 = sadd.s32 %s55, 1
    %p59 = scmp.eq.s32.totalorder %s21, 1
    %p60 = scmp.ne.s32.totalorder %s55, %s57
    %p61 = scmp.eq.s32.totalorder %s21, 0
    %p62 = por %p60, %p61
    %p63 = scmp.ne.s32.totalorder %s55, %s57
    %p64 = scmp.eq.s32.totalorder %s26, 1
    %p65 = por %p63, %p64
    %p66 = scmp.ne.s32.totalorder %s57, %s58
    %p67 = scmp.eq.s32.totalorder %s26, 0
    %p68 = por %p66, %p67
    %p69 = scmp.ne.s32.totalorder %s57, %s58
    %p70 = scmp.eq.s32.totalorder %s27, 1
    %p71 = por %p69, %p70
    %p73 = scmp.ne.s32.totalorder %s58, %s72
    %p74 = scmp.eq.s32.totalorder %s27, 0
    %p75 = por %p73, %p74
    %s76 = ssub.s32 %s21, %s28
    %p77 = scmp.eq.s32.totalorder %s76, 0
    %s79 = sadd.s32 %s78, 1
    %s80 = scalar_select %p77, %s78, %s79
    %p83 = pneg %p77
    %p84 = scmp.eq.s32.totalorder %s21, 1
    %p85 = por %p83, %p84
    %p86 = scmp.ne.s32.totalorder %s78, %s81
    %p87 = scmp.eq.s32.totalorder %s21, 0
    %p88 = por %p86, %p87
    %p89 = scmp.ne.s32.totalorder %s78, %s81
    %p90 = scmp.eq.s32.totalorder %s26, 1
    %p91 = por %p89, %p90
    %p92 = scmp.ne.s32.totalorder %s81, %s82
    %p93 = scmp.eq.s32.totalorder %s26, 0
    %p94 = por %p92, %p93
    %p95 = scmp.ne.s32.totalorder %s81, %s82
    %p96 = scmp.eq.s32.totalorder %s27, 1
    %p97 = por %p95, %p96
    %p99 = scmp.ne.s32.totalorder %s82, %s98
    %p100 = scmp.eq.s32.totalorder %s27, 0
    %p101 = por %p99, %p100
    %s103 = sadd.s32 %s102, 1
    %p106 = scmp.eq.s32.totalorder %s21, 1
    %p107 = scmp.ne.s32.totalorder %s102, %s104
    %p108 = scmp.eq.s32.totalorder %s21, 0
    %p109 = por %p107, %p108
    %p110 = scmp.ne.s32.totalorder %s102, %s104
    %p111 = scmp.eq.s32.totalorder %s26, 1
    %p112 = por %p110, %p111
    %p113 = scmp.ne.s32.totalorder %s104, %s105
    %p114 = scmp.eq.s32.totalorder %s26, 0
    %p115 = por %p113, %p114
    %p116 = scmp.ne.s32.totalorder %s104, %s105
    %p117 = scmp.eq.s32.totalorder %s27, 1
    %p118 = por %p116, %p117
    %p120 = scmp.ne.s32.totalorder %s105, %s119
    %p121 = scmp.eq.s32.totalorder %s27, 0
    %p122 = por %p120, %p121
    %s124 = sadd.s32 %s123, 1
    %p127 = scmp.eq.s32.totalorder %s21, 1
    %p128 = scmp.ne.s32.totalorder %s123, %s125
    %p129 = scmp.eq.s32.totalorder %s21, 0
    %p130 = por %p128, %p129
    %p131 = scmp.ne.s32.totalorder %s123, %s125
    %p132 = scmp.eq.s32.totalorder %s26, 1
    %p133 = por %p131, %p132
    %p134 = scmp.ne.s32.totalorder %s125, %s126
    %p135 = scmp.eq.s32.totalorder %s26, 0
    %p136 = por %p134, %p135
    %p137 = scmp.ne.s32.totalorder %s125, %s126
    %p138 = scmp.eq.s32.totalorder %s27, 1
    %p139 = por %p137, %p138
    %p141 = scmp.ne.s32.totalorder %s126, %s140
    %p142 = scmp.eq.s32.totalorder %s27, 0
    %p143 = por %p141, %p142
    %s145 = sadd.s32 %s144, 1
    %p148 = scmp.eq.s32.totalorder %s21, 1
    %p149 = scmp.ne.s32.totalorder %s144, %s146
    %p150 = scmp.eq.s32.totalorder %s21, 0
    %p151 = por %p149, %p150
    %p152 = scmp.ne.s32.totalorder %s144, %s146
    %p153 = scmp.eq.s32.totalorder %s26, 1
    %p154 = por %p152, %p153
    %p155 = scmp.ne.s32.totalorder %s146, %s147
    %p156 = scmp.eq.s32.totalorder %s26, 0
    %p157 = por %p155, %p156
    %p158 = scmp.ne.s32.totalorder %s146, %s147
    %p159 = scmp.eq.s32.totalorder %s27, 1
    %p160 = por %p158, %p159
    %p162 = scmp.ne.s32.totalorder %s147, %s161
    %p163 = scmp.eq.s32.totalorder %s27, 0
    %p164 = por %p162, %p163
    %s166 = sadd.s32 %s165, 1
    %p169 = scmp.eq.s32.totalorder %s21, 1
    %p170 = scmp.ne.s32.totalorder %s165, %s167
    %p171 = scmp.eq.s32.totalorder %s21, 0
    %p172 = por %p170, %p171
    %p173 = scmp.ne.s32.totalorder %s165, %s167
    %p174 = scmp.eq.s32.totalorder %s26, 1
    %p175 = por %p173, %p174
    %p176 = scmp.ne.s32.totalorder %s167, %s168
    %p177 = scmp.eq.s32.totalorder %s26, 0
    %p178 = por %p176, %p177
    %p179 = scmp.ne.s32.totalorder %s167, %s168
    %p180 = scmp.eq.s32.totalorder %s27, 1
    %p181 = por %p179, %p180
    %p183 = scmp.ne.s32.totalorder %s168, %s182
    %p184 = scmp.eq.s32.totalorder %s27, 0
    %p185 = por %p183, %p184
    %s187 = sadd.s32 %s186, 1
    %p190 = scmp.eq.s32.totalorder %s21, 1
    %p191 = scmp.ne.s32.totalorder %s186, %s188
    %p192 = scmp.eq.s32.totalorder %s21, 0
    %p193 = por %p191, %p192
    %p194 = scmp.ne.s32.totalorder %s186, %s188
    %p195 = scmp.eq.s32.totalorder %s26, 1
    %p196 = por %p194, %p195
    %p197 = scmp.ne.s32.totalorder %s188, %s189
    %p198 = scmp.eq.s32.totalorder %s26, 0
    %p199 = por %p197, %p198
    %p200 = scmp.ne.s32.totalorder %s188, %s189
    %p201 = scmp.eq.s32.totalorder %s27, 1
    %p202 = por %p200, %p201
    %p204 = scmp.ne.s32.totalorder %s189, %s203
    %p205 = scmp.eq.s32.totalorder %s27, 0
    %p206 = por %p204, %p205
    %s208 = sadd.s32 %s207, 1
    %p211 = scmp.eq.s32.totalorder %s21, 1
    %p212 = scmp.ne.s32.totalorder %s207, %s209
    %p213 = scmp.eq.s32.totalorder %s21, 0
    %p214 = por %p212, %p213
    %p215 = scmp.ne.s32.totalorder %s207, %s209
    %p216 = scmp.eq.s32.totalorder %s26, 1
    %p217 = por %p215, %p216
    %p218 = scmp.ne.s32.totalorder %s209, %s210
    %p219 = scmp.eq.s32.totalorder %s26, 0
    %p220 = por %p218, %p219
    %p221 = scmp.ne.s32.totalorder %s209, %s210
    %p222 = scmp.eq.s32.totalorder %s27, 1
    %p223 = por %p221, %p222
    %p225 = scmp.ne.s32.totalorder %s210, %s224
    %p226 = scmp.eq.s32.totalorder %s27, 0
    %p227 = por %p225, %p226
    %s229 = sadd.s32 %s228, 1
    %p232 = scmp.eq.s32.totalorder %s21, 1
    %p233 = scmp.ne.s32.totalorder %s228, %s230
    %p234 = scmp.eq.s32.totalorder %s21, 0
    %p235 = por %p233, %p234
    %p236 = scmp.ne.s32.totalorder %s228, %s230
    %p237 = scmp.eq.s32.totalorder %s26, 1
    %p238 = por %p236, %p237
    %p239 = scmp.ne.s32.totalorder %s230, %s231
    %p240 = scmp.eq.s32.totalorder %s26, 0
    %p241 = por %p239, %p240
    %p242 = scmp.ne.s32.totalorder %s230, %s231
    %p243 = scmp.eq.s32.totalorder %s27, 1
    %p244 = por %p242, %p243
    %p246 = scmp.ne.s32.totalorder %s231, %s245
    %p247 = scmp.eq.s32.totalorder %s27, 0
    %p248 = por %p246, %p247
    %s250 = sadd.s32 %s249, 1
    %p253 = scmp.eq.s32.totalorder %s21, 1
    %p254 = scmp.ne.s32.totalorder %s249, %s251
    %p255 = scmp.eq.s32.totalorder %s21, 0
    %p256 = por %p254, %p255
    %p257 = scmp.ne.s32.totalorder %s249, %s251
    %p258 = scmp.eq.s32.totalorder %s26, 1
    %p259 = por %p257, %p258
    %p260 = scmp.ne.s32.totalorder %s251, %s252
    %p261 = scmp.eq.s32.totalorder %s26, 0
    %p262 = por %p260, %p261
    %p263 = scmp.ne.s32.totalorder %s251, %s252
    %p264 = scmp.eq.s32.totalorder %s27, 1
    %p265 = por %p263, %p264
    %p267 = scmp.ne.s32.totalorder %s252, %s266
    %p268 = scmp.eq.s32.totalorder %s27, 0
    %p269 = por %p267, %p268
    %s271 = sadd.s32 %s270, 1
    %p274 = scmp.eq.s32.totalorder %s21, 1
    %p275 = scmp.ne.s32.totalorder %s270, %s272
    %p276 = scmp.eq.s32.totalorder %s21, 0
    %p277 = por %p275, %p276
    %p278 = scmp.ne.s32.totalorder %s270, %s272
    %p279 = scmp.eq.s32.totalorder %s26, 1
    %p280 = por %p278, %p279
    %p281 = scmp.ne.s32.totalorder %s272, %s273
    %p282 = scmp.eq.s32.totalorder %s26, 0
    %p283 = por %p281, %p282
    %p284 = scmp.ne.s32.totalorder %s272, %s273
    %p285 = scmp.eq.s32.totalorder %s27, 1
    %p286 = por %p284, %p285
    %p288 = scmp.ne.s32.totalorder %s273, %s287
    %p289 = scmp.eq.s32.totalorder %s27, 0
    %p290 = por %p288, %p289
    %s292 = sadd.s32 %s291, 1
    %p295 = scmp.eq.s32.totalorder %s21, 1
    %p296 = scmp.ne.s32.totalorder %s291, %s293
    %p297 = scmp.eq.s32.totalorder %s21, 0
    %p298 = por %p296, %p297
    %p299 = scmp.ne.s32.totalorder %s291, %s293
    %p300 = scmp.eq.s32.totalorder %s26, 1
    %p301 = por %p299, %p300
    %p302 = scmp.ne.s32.totalorder %s293, %s294
    %p303 = scmp.eq.s32.totalorder %s26, 0
    %p304 = por %p302, %p303
    %p305 = scmp.ne.s32.totalorder %s293, %s294
    %p306 = scmp.eq.s32.totalorder %s27, 1
    %p307 = por %p305, %p306
    %p309 = scmp.ne.s32.totalorder %s294, %s308
    %p310 = scmp.eq.s32.totalorder %s27, 0
    %p311 = por %p309, %p310
    %s313 = sadd.s32 %s312, 1
    %p316 = scmp.eq.s32.totalorder %s21, 1
    %p317 = scmp.ne.s32.totalorder %s312, %s314
    %p318 = scmp.eq.s32.totalorder %s21, 0
    %p319 = por %p317, %p318
    %p320 = scmp.ne.s32.totalorder %s312, %s314
    %p321 = scmp.eq.s32.totalorder %s26, 1
    %p322 = por %p320, %p321
    %p323 = scmp.ne.s32.totalorder %s314, %s315
    %p324 = scmp.eq.s32.totalorder %s26, 0
    %p325 = por %p323, %p324
    %p326 = scmp.ne.s32.totalorder %s314, %s315
    %p327 = scmp.eq.s32.totalorder %s27, 1
    %p328 = por %p326, %p327
    %p330 = scmp.ne.s32.totalorder %s315, %s329
    %p331 = scmp.eq.s32.totalorder %s27, 0
    %p332 = por %p330, %p331
    %s334 = sadd.s32 %s333, 1
    %p337 = scmp.eq.s32.totalorder %s21, 1
    %p338 = scmp.ne.s32.totalorder %s333, %s335
    %p339 = scmp.eq.s32.totalorder %s21, 0
    %p340 = por %p338, %p339
    %p341 = scmp.ne.s32.totalorder %s333, %s335
    %p342 = scmp.eq.s32.totalorder %s26, 1
    %p343 = por %p341, %p342
    %p344 = scmp.ne.s32.totalorder %s335, %s336
    %p345 = scmp.eq.s32.totalorder %s26, 0
    %p346 = por %p344, %p345
    %p347 = scmp.ne.s32.totalorder %s335, %s336
    %p348 = scmp.eq.s32.totalorder %s27, 1
    %p349 = por %p347, %p348
    %p351 = scmp.ne.s32.totalorder %s336, %s350
    %p352 = scmp.eq.s32.totalorder %s27, 0
    %p353 = por %p351, %p352
    %s354 = ssub.s32 %s21, %s28
    %p355 = scmp.eq.s32.totalorder %s354, 0
    %s357 = sadd.s32 %s356, 1
    %s358 = scalar_select %p355, %s356, %s357
    %p361 = pneg %p355
    %p362 = scmp.eq.s32.totalorder %s21, 1
    %p363 = por %p361, %p362
    %p364 = scmp.ne.s32.totalorder %s356, %s359
    %p365 = scmp.eq.s32.totalorder %s21, 0
    %p366 = por %p364, %p365
    %p367 = scmp.ne.s32.totalorder %s356, %s359
    %p368 = scmp.eq.s32.totalorder %s26, 1
    %p369 = por %p367, %p368
    %p370 = scmp.ne.s32.totalorder %s359, %s360
    %p371 = scmp.eq.s32.totalorder %s26, 0
    %p372 = por %p370, %p371
    %p373 = scmp.ne.s32.totalorder %s359, %s360
    %p374 = scmp.eq.s32.totalorder %s27, 1
    %p375 = por %p373, %p374
    %p377 = scmp.ne.s32.totalorder %s360, %s376
    %p378 = scmp.eq.s32.totalorder %s27, 0
    %p379 = por %p377, %p378
    %p380 = scmp.le.s32.totalorder 1, %s21
    %p381 = scmp.lt.s32.totalorder %s21, 3
    %p382 = pnand %p380, %p381
    %p383 = pneg %p382
    // Predicated region
    $region9: #{gpt2_forward.3} parent=5 // pred_check
      _
    $region10: #{gpt2_forward.3} parent=5 // pred_check_branch
      %385 = sbr.rel (%p382) target = $region12
    $region11: #{gpt2_forward.3} parent=5 // pred_region
      %s386 = ssub.s32 %s21, 1
      // Predicated region
      $region13: #{gpt2_forward.3} parent=11 // pred_check
        %p387 = pneg %p68
      $region14: #{gpt2_forward.3} parent=11 // pred_check_branch
        %389 = sbr.rel (%p387) target = $region16
      $region15: #{gpt2_forward.3} parent=11 // pred_region
        _
      $region16: #{gpt2_forward.3} parent=11 // pred_fallthru
        _
      // Predicated region
      $region17: #{gpt2_forward.3} parent=11 // pred_check
        %p390 = pneg %p115
      $region18: #{gpt2_forward.3} parent=11 // pred_check_branch
        %392 = sbr.rel (%p390) target = $region20
      $region19: #{gpt2_forward.3} parent=11 // pred_region
        _
      $region20: #{gpt2_forward.3} parent=11 // pred_fallthru
        _
      // Predicated region
      $region21: #{gpt2_forward.3} parent=11 // pred_check
        %p393 = pneg %p136
      $region22: #{gpt2_forward.3} parent=11 // pred_check_branch
        %395 = sbr.rel (%p393) target = $region24
      $region23: #{gpt2_forward.3} parent=11 // pred_region
        _
      $region24: #{gpt2_forward.3} parent=11 // pred_fallthru
        _
      // Predicated region
      $region25: #{gpt2_forward.3} parent=11 // pred_check
        %p396 = pneg %p157
      $region26: #{gpt2_forward.3} parent=11 // pred_check_branch
        %398 = sbr.rel (%p396) target = $region28
      $region27: #{gpt2_forward.3} parent=11 // pred_region
        _
      $region28: #{gpt2_forward.3} parent=11 // pred_fallthru
        _
      // Predicated region
      $region29: #{gpt2_forward.3} parent=11 // pred_check
        %p399 = pneg %p178
      $region30: #{gpt2_forward.3} parent=11 // pred_check_branch
        %401 = sbr.rel (%p399) target = $region32
      $region31: #{gpt2_forward.3} parent=11 // pred_region
        _
      $region32: #{gpt2_forward.3} parent=11 // pred_fallthru
        _
      // Predicated region
      $region33: #{gpt2_forward.3} parent=11 // pred_check
        %p402 = pneg %p199
      $region34: #{gpt2_forward.3} parent=11 // pred_check_branch
        %404 = sbr.rel (%p402) target = $region36
      $region35: #{gpt2_forward.3} parent=11 // pred_region
        _
      $region36: #{gpt2_forward.3} parent=11 // pred_fallthru
        _
      // Predicated region
      $region37: #{gpt2_forward.3} parent=11 // pred_check
        %p405 = pneg %p220
      $region38: #{gpt2_forward.3} parent=11 // pred_check_branch
        %407 = sbr.rel (%p405) target = $region40
      $region39: #{gpt2_forward.3} parent=11 // pred_region
        _
      $region40: #{gpt2_forward.3} parent=11 // pred_fallthru
        _
      // Predicated region
      $region41: #{gpt2_forward.3} parent=11 // pred_check
        %p408 = pneg %p241
      $region42: #{gpt2_forward.3} parent=11 // pred_check_branch
        %410 = sbr.rel (%p408) target = $region44
      $region43: #{gpt2_forward.3} parent=11 // pred_region
        _
      $region44: #{gpt2_forward.3} parent=11 // pred_fallthru
        _
      // Predicated region
      $region45: #{gpt2_forward.3} parent=11 // pred_check
        %p411 = pneg %p262
      $region46: #{gpt2_forward.3} parent=11 // pred_check_branch
        %413 = sbr.rel (%p411) target = $region48
      $region47: #{gpt2_forward.3} parent=11 // pred_region
        _
      $region48: #{gpt2_forward.3} parent=11 // pred_fallthru
        _
      // Predicated region
      $region49: #{gpt2_forward.3} parent=11 // pred_check
        %p414 = pneg %p283
      $region50: #{gpt2_forward.3} parent=11 // pred_check_branch
        %416 = sbr.rel (%p414) target = $region52
      $region51: #{gpt2_forward.3} parent=11 // pred_region
        _
      $region52: #{gpt2_forward.3} parent=11 // pred_fallthru
        _
      // Predicated region
      $region53: #{gpt2_forward.3} parent=11 // pred_check
        %p417 = pneg %p304
      $region54: #{gpt2_forward.3} parent=11 // pred_check_branch
        %419 = sbr.rel (%p417) target = $region56
      $region55: #{gpt2_forward.3} parent=11 // pred_region
        _
      $region56: #{gpt2_forward.3} parent=11 // pred_fallthru
        _
      // Predicated region
      $region57: #{gpt2_forward.3} parent=11 // pred_check
        %p420 = pneg %p325
      $region58: #{gpt2_forward.3} parent=11 // pred_check_branch
        %422 = sbr.rel (%p420) target = $region60
      $region59: #{gpt2_forward.3} parent=11 // pred_region
        _
      $region60: #{gpt2_forward.3} parent=11 // pred_fallthru
        _
      // Predicated region
      $region61: #{gpt2_forward.3} parent=11 // pred_check
        %p423 = pneg %p346
      $region62: #{gpt2_forward.3} parent=11 // pred_check_branch
        %425 = sbr.rel (%p423) target = $region64
      $region63: #{gpt2_forward.3} parent=11 // pred_region
        _
      $region64: #{gpt2_forward.3} parent=11 // pred_fallthru
        _
    $region12: #{gpt2_forward.3} parent=5 // pred_fallthru
      _
    %p426 = scmp.lt.s32.totalorder %s21, 2
    // Predicated region
    $region65: #{gpt2_forward.3} parent=5 // pred_check
      %p427 = pneg %p426
    $region66: #{gpt2_forward.3} parent=5 // pred_check_branch
      %429 = sbr.rel (%p427) target = $region68
    $region67: #{gpt2_forward.3} parent=5 // pred_region
      // Predicated region
      $region69: #{gpt2_forward.3} parent=67 // pred_check
        %p430 = pneg %p41
      $region70: #{gpt2_forward.3} parent=67 // pred_check_branch
        %432 = sbr.rel (%p430) target = $region72
      $region71: #{gpt2_forward.3} parent=67 // pred_region
        %p433 = scmp.lt.s32.totalorder %s21, 1
        %s434 = scalar_select %p433, %s21, 1
        %s435 = smul.addr %s434, 8
        %s436 = scalar_lea.vmem %s0, %s435
      $region72: #{gpt2_forward.3} parent=67 // pred_fallthru
        _
      // Predicated region
      $region73: #{gpt2_forward.3} parent=67 // pred_check
        %p437 = pneg %p88
      $region74: #{gpt2_forward.3} parent=67 // pred_check_branch
        %439 = sbr.rel (%p437) target = $region76
      $region75: #{gpt2_forward.3} parent=67 // pred_region
        %p440 = scmp.lt.s32.totalorder %s21, 1
        %s441 = scalar_select %p440, %s21, 1
        %s442 = scalar_lea.vmem %s2, %s441
      $region76: #{gpt2_forward.3} parent=67 // pred_fallthru
        _
    $region68: #{gpt2_forward.3} parent=5 // pred_fallthru
      _
    %p443 = scmp.le.s32.totalorder 1, %s21
    %p444 = scmp.lt.s32.totalorder %s21, 3
    %p445 = pnand %p443, %p444
    %p446 = pneg %p445
    // Predicated region
    $region77: #{gpt2_forward.3} parent=5 // pred_check
      _
    $region78: #{gpt2_forward.3} parent=5 // pred_check_branch
      %448 = sbr.rel (%p445) target = $region80
    $region79: #{gpt2_forward.3} parent=5 // pred_region
      %s449 = ssub.s32 %s21, 1
      %p450 = scmp.lt.s32.totalorder %s26, 1
      %s451 = scalar_select %p450, %s26, 1
      %s452 = smul.addr %s451, 8
      %s453 = scalar_lea.vmem %s0, %s452
      %p454 = pneg %p47
      %p455 = pneg %p44
      %p456 = pneg %p68
      %p457 = pneg %p65
      %p458 = scmp.lt.s32.totalorder %s26, 1
      %s459 = scalar_select %p458, %s26, 1
      %s460 = scalar_lea.vmem %s2, %s459
      %p461 = pneg %p94
      %p462 = pneg %p91
      %p463 = pneg %p115
      %p464 = pneg %p112
      %p465 = pneg %p136
      %p466 = pneg %p133
      %p467 = pneg %p157
      %p468 = pneg %p154
      %p469 = pneg %p178
      %p470 = pneg %p175
      %p471 = pneg %p199
      %p472 = pneg %p196
      %p473 = pneg %p220
      %p474 = pneg %p217
      %p475 = pneg %p241
      %p476 = pneg %p238
      %p477 = pneg %p262
      %p478 = pneg %p259
      %p479 = pneg %p283
      %p480 = pneg %p280
      %p481 = pneg %p304
      %p482 = pneg %p301
      %p483 = pneg %p325
      %p484 = pneg %p322
      %p485 = pneg %p346
      %p486 = pneg %p343
      %p487 = pneg %p372
      %p488 = pneg %p369
      %p489 = scmp.lt.s32.totalorder %s26, 1
      %s490 = scalar_select %p489, %s26, 1
      %s491 = smul.addr %s490, 8
      %s492 = scalar_lea.vmem %s15, %s491
      %p493 = scmp.lt.s32.totalorder %s26, 1
      %s494 = scalar_select %p493, %s26, 1
      %s495 = smul.addr %s494, 8
      %s496 = scalar_lea.vmem %s0, %s495
      %p497 = scmp.lt.s32.totalorder %s26, 1
      %s498 = scalar_select %p497, %s26, 1
      %s499 = scalar_lea.vmem %s2, %s498
      %p500 = scmp.lt.s32.totalorder %s26, 1
      %s501 = scalar_select %p500, %s26, 1
      %s502 = smul.addr %s501, 8
      %s503 = scalar_lea.vmem %s15, %s502
      %v505 = vld [vmem:[%s496] sm:$0xff]
      %v506 = vld [vmem:[%s3] sm:$0x1]
      %v507 = vld [vmem:[%s4] sm:$0x1]
      %vm508 = vcmask 261120
      %v509 = vsel %vm508, %v505, 0.0
      %510 = vadd.xlane.f32.xlu0 %v509
      %v511 = vpop.xlane.xlu0 %510
      %v512 = vrcp.pop 32.0
      %v513 = vmul.f32 %v511, %v512
      %v514 = vsub.f32 %v505, %v513
      %v515 = vmul.f32 %v514, %v514
      %v516 = vsel %vm508, %v515, 0.0
      %517 = vadd.xlane.f32.xlu0 %v516
      %v518 = vpop.xlane.xlu0 %517
      %v519 = vmul.f32 %v518, %v512
      %v520 = vadd.f32 %v519, 1e-05
      %v521 = vrsqrt.pop %v520
      %v522 = vmul.f32 %v514, %v521
      %v524 = vlaneseq
      %v525 = vshrl.u32 %v524, 7
      %v526 = vsub.s32 0, %v525
      %v527 = vrot.slane %v506, %v526
      %v529 = vmul.f32 %v522, %v527
      %v531 = vlaneseq
      %v532 = vshrl.u32 %v531, 7
      %v533 = vsub.s32 0, %v532
      %v534 = vrot.slane %v507, %v533
      %v536 = vadd.f32 %v529, %v534
      %v537 = vpack.c.bf16 %v536, %v536
      %v538 = vld [vmem:[%s5] sm:$0xf]
      %v539 = vld [vmem:[%s5 + $0x4] sm:$0xf]
      %v540 = vld [vmem:[%s5 + $0x8] sm:$0xf]
      %v541 = vld [vmem:[%s5 + $0xc] sm:$0xf]
      %v542 = vld [vmem:[%s6] sm:$0x1]
      %v544 = vlaneseq
      %v545 = vshrl.u32 %v544, 7
      %v546 = vsub.s32 0, %v545
      %v547 = vrot.slane %v542, %v546
      %v553 = vunpack.c.l.b16 %v538
      %v554 = vunpack.c.l.b16 %v539
      %v555 = vunpack.c.l.b16 %v540
      %v556 = vunpack.c.l.b16 %v541
      %v557 = vpack.c.b16 %v554, %v553
      %v558 = vpack.c.b16 %v556, %v555
      %v562 = vsel %vm508, %v537, 0
      %564 = vmatprep.subr.bf16.mxu0 0
      %565 = vmatpush1.bf16.msra.mxu0 0
      %566 = vmatprep.subr.bf16.mxu0 0
      %567 = vmatpush1.bf16.msra.mxu0 0
      %568 = vmatprep.subr.bf16.mxu0 0
      %569 = vmatpush1.bf16.msra.mxu0 0
      %570 = vmatprep.subr.bf16.mxu0 0
      %571 = vmatpush1.bf16.msra.mxu0 0
      %572 = vmatprep.subr.bf16.mxu0 0
      %573 = vmatpush1.bf16.msra.mxu0 0
      %574 = vmatprep.subr.bf16.mxu0 0
      %575 = vmatpush1.bf16.msra.mxu0 0
      %576 = vmatprep.subr.bf16.mxu0 0
      %577 = vmatpush1.bf16.msra.mxu0 %v558
      %578 = vmatprep.subr.bf16.mxu0 0
      %579 = vmatpush1.bf16.msra.mxu0 %v557
      %580 = vmatprep.subr.bf16.mxu0 0
      %581 = vmatpush2.bf16.msra.mxu0 0
      %582 = vmatprep.subr.bf16.mxu0 0
      %583 = vmatpush2.bf16.msra.mxu0 0
      %584 = vmatprep.subr.bf16.mxu0 0
      %585 = vmatpush2.bf16.msra.mxu0 0
      %586 = vmatprep.subr.bf16.mxu0 0
      %587 = vmatpush2.bf16.msra.mxu0 0
      %588 = vmatprep.subr.bf16.mxu0 0
      %589 = vmatpush2.bf16.msra.mxu0 0
      %590 = vmatprep.subr.bf16.mxu0 0
      %591 = vmatpush2.bf16.msra.mxu0 0
      %592 = vmatprep.subr.bf16.mxu0 0
      %593 = vmatpush2.bf16.msra.mxu0 0
      %594 = vmatprep.subr.bf16.mxu0 0
      %595 = vmatpush2.bf16.msra.mxu0 0
      %596 = vmatprep.mubr.bf16.mxu0 0
      %597 = vmatmul.mubr.bf16.gmra.mxu0 %v562
      %v598 = vpop.f32.mrf.mxu0
      %v599 = vadd.f32 %v547, %v598
      %v600 = vpop.f32.mrf.mxu0
      %v601 = vpop.f32.mrf.mxu0
      %v602 = vpop.f32.mrf.mxu0
      %603 = vdwg.mxu0
      %v604 = vpack.c.bf16 %v599, %v599
      %v605 = vld [vmem:[%s1] sm:$0xff]
      %v606 = vld [vmem:[%s499] sm:$0x1]
      %v608 = vlaneseq
      %v609 = vshrl.u32 %v608, 7
      %v610 = vsub.s32 0, %v609
      %v611 = vrot.slane %v606, %v610
      %v613 = vadd.f32 %v605, %v611
      %615 = vrot.lane.b32.xlu0 %v604, 96
      %v616 = vpop.permute.xlu0 %615
      %vm617 = vcmask 64512
      %v619 = vsel %vm617, %v604, 0
      %v622 = vsel %vm617, %v616, 0
      %624 = vmatprep.subr.bf16.mxu0 0
      %625 = vmatpush1.bf16.xpose.msra.mxu0 0
      %626 = vmatprep.subr.bf16.mxu0 0
      %627 = vmatpush1.bf16.xpose.msra.mxu0 0
      %628 = vmatprep.subr.bf16.mxu0 0
      %629 = vmatpush1.bf16.xpose.msra.mxu0 0
      %630 = vmatprep.subr.bf16.mxu0 0
      %631 = vmatpush1.bf16.xpose.msra.mxu0 0
      %632 = vmatprep.subr.bf16.mxu0 0
      %633 = vmatpush1.bf16.xpose.msra.mxu0 0
      %634 = vmatprep.subr.bf16.mxu0 0
      %635 = vmatpush1.bf16.xpose.msra.mxu0 0
      %636 = vmatprep.subr.bf16.mxu0 0
      %637 = vmatpush1.bf16.xpose.msra.mxu0 0
      %638 = vmatprep.subr.bf16.mxu0 0
      %639 = vmatpush1.bf16.xpose.msra.mxu0 %v622
      %640 = vmatprep.subr.bf16.mxu0 0
      %641 = vmatpush2.bf16.xpose.msra.mxu0 0
      %642 = vmatprep.subr.bf16.mxu0 0
      %643 = vmatpush2.bf16.xpose.msra.mxu0 0
      %644 = vmatprep.subr.bf16.mxu0 0
      %645 = vmatpush2.bf16.xpose.msra.mxu0 0
      %646 = vmatprep.subr.bf16.mxu0 0
      %647 = vmatpush2.bf16.xpose.msra.mxu0 0
      %648 = vmatprep.subr.bf16.mxu0 0
      %649 = vmatpush2.bf16.xpose.msra.mxu0 0
      %650 = vmatprep.subr.bf16.mxu0 0
      %651 = vmatpush2.bf16.xpose.msra.mxu0 0
      %652 = vmatprep.subr.bf16.mxu0 0
      %653 = vmatpush2.bf16.xpose.msra.mxu0 0
      %654 = vmatprep.subr.bf16.mxu0 0
      %655 = vmatpush2.bf16.xpose.msra.mxu0 0
      %656 = vmatprep.mubr.bf16.mxu0 0
      %657 = vmatmul.mubr.bf16.gmra.mxu0 %v619
      %v658 = vpop.f32.mrf.mxu0
      %v659 = vadd.f32 %v613, %v658
      %v660 = vpop.f32.mrf.mxu0
      %v661 = vpop.f32.mrf.mxu0
      %v662 = vpop.f32.mrf.mxu0
      %663 = vdwg.mxu0
      %v664 = vsel %vm617, %v659, -inf
      %665 = vmax.xlane.f32.xlu0 %v664
      %v666 = vpop.xlane.xlu0 %665
      %v667 = vsub.f32 %v659, %v666
      %v668 = vmul.f32 %v667, 1.442695
      %v669 = vpow.pop %v668
      %v670 = vsel %vm617, %v669, 0.0
      %671 = vadd.xlane.f32.xlu0 %v670
      %v672 = vpop.xlane.xlu0 %671
      %v673 = vrcp.pop %v672
      %v674 = vmul.f32 %v669, %v673
      %v675 = vpack.c.bf16 %v674, %v674
      %676 = vrot.lane.b32.xlu0 %v604, 64
      %v677 = vpop.permute.xlu0 %676
      %v679 = vsel %vm617, %v675, 0
      %vm681 = vcmask 1043456
      %v683 = vsel %vm681, %v677, 0
      %685 = vmatprep.subr.bf16.mxu0 0
      %686 = vmatpush1.bf16.msra.mxu0 0
      %687 = vmatprep.subr.bf16.mxu0 0
      %688 = vmatpush1.bf16.msra.mxu0 0
      %689 = vmatprep.subr.bf16.mxu0 0
      %690 = vmatpush1.bf16.msra.mxu0 0
      %691 = vmatprep.subr.bf16.mxu0 0
      %692 = vmatpush1.bf16.msra.mxu0 0
      %693 = vmatprep.subr.bf16.mxu0 0
      %694 = vmatpush1.bf16.msra.mxu0 0
      %695 = vmatprep.subr.bf16.mxu0 0
      %696 = vmatpush1.bf16.msra.mxu0 0
      %697 = vmatprep.subr.bf16.mxu0 0
      %698 = vmatpush1.bf16.msra.mxu0 0
      %699 = vmatprep.subr.bf16.mxu0 0
      %700 = vmatpush1.bf16.msra.mxu0 %v683
      %701 = vmatprep.subr.bf16.mxu0 0
      %702 = vmatpush2.bf16.msra.mxu0 0
      %703 = vmatprep.subr.bf16.mxu0 0
      %704 = vmatpush2.bf16.msra.mxu0 0
      %705 = vmatprep.subr.bf16.mxu0 0
      %706 = vmatpush2.bf16.msra.mxu0 0
      %707 = vmatprep.subr.bf16.mxu0 0
      %708 = vmatpush2.bf16.msra.mxu0 0
      %709 = vmatprep.subr.bf16.mxu0 0
      %710 = vmatpush2.bf16.msra.mxu0 0
      %711 = vmatprep.subr.bf16.mxu0 0
      %712 = vmatpush2.bf16.msra.mxu0 0
      %713 = vmatprep.subr.bf16.mxu0 0
      %714 = vmatpush2.bf16.msra.mxu0 0
      %715 = vmatprep.subr.bf16.mxu0 0
      %716 = vmatpush2.bf16.msra.mxu0 0
      %717 = vmatprep.mubr.bf16.mxu0 0
      %718 = vmatmul.mubr.bf16.gmra.mxu0 %v679
      %v719 = vpop.f32.mrf.mxu0
      %v720 = vadd.f32 0.0, %v719
      %v721 = vpop.f32.mrf.mxu0
      %v722 = vpop.f32.mrf.mxu0
      %v723 = vpop.f32.mrf.mxu0
      %724 = vdwg.mxu0
      %725 = vst.msk [vmem:[#allocation2] sm:$0xff] %vm617, %v720
      %726 = vrot.lane.b32.xlu0 %v604, 120
      %v727 = vpop.permute.xlu0 %726
      %728 = vrot.lane.b32.xlu0 %v604, 88
      %v729 = vpop.permute.xlu0 %728
      %v731 = vsel %vm617, %v727, 0
      %v734 = vsel %vm617, %v729, 0
      %736 = vmatprep.subr.bf16.mxu0 0
      %737 = vmatpush1.bf16.xpose.msra.mxu0 0
      %738 = vmatprep.subr.bf16.mxu0 0
      %739 = vmatpush1.bf16.xpose.msra.mxu0 0
      %740 = vmatprep.subr.bf16.mxu0 0
      %741 = vmatpush1.bf16.xpose.msra.mxu0 0
      %742 = vmatprep.subr.bf16.mxu0 0
      %743 = vmatpush1.bf16.xpose.msra.mxu0 0
      %744 = vmatprep.subr.bf16.mxu0 0
      %745 = vmatpush1.bf16.xpose.msra.mxu0 0
      %746 = vmatprep.subr.bf16.mxu0 0
      %747 = vmatpush1.bf16.xpose.msra.mxu0 0
      %748 = vmatprep.subr.bf16.mxu0 0
      %749 = vmatpush1.bf16.xpose.msra.mxu0 0
      %750 = vmatprep.subr.bf16.mxu0 0
      %751 = vmatpush1.bf16.xpose.msra.mxu0 %v734
      %752 = vmatprep.subr.bf16.mxu0 0
      %753 = vmatpush2.bf16.xpose.msra.mxu0 0
      %754 = vmatprep.subr.bf16.mxu0 0
      %755 = vmatpush2.bf16.xpose.msra.mxu0 0
      %756 = vmatprep.subr.bf16.mxu0 0
      %757 = vmatpush2.bf16.xpose.msra.mxu0 0
      %758 = vmatprep.subr.bf16.mxu0 0
      %759 = vmatpush2.bf16.xpose.msra.mxu0 0
      %760 = vmatprep.subr.bf16.mxu0 0
      %761 = vmatpush2.bf16.xpose.msra.mxu0 0
      %762 = vmatprep.subr.bf16.mxu0 0
      %763 = vmatpush2.bf16.xpose.msra.mxu0 0
      %764 = vmatprep.subr.bf16.mxu0 0
      %765 = vmatpush2.bf16.xpose.msra.mxu0 0
      %766 = vmatprep.subr.bf16.mxu0 0
      %767 = vmatpush2.bf16.xpose.msra.mxu0 0
      %768 = vmatprep.mubr.bf16.mxu0 0
      %769 = vmatmul.mubr.bf16.gmra.mxu0 %v731
      %v770 = vpop.f32.mrf.mxu0
      %v771 = vadd.f32 %v613, %v770
      %v772 = vpop.f32.mrf.mxu0
      %v773 = vpop.f32.mrf.mxu0
      %v774 = vpop.f32.mrf.mxu0
      %775 = vdwg.mxu0
      %v776 = vsel %vm617, %v771, -inf
      %777 = vmax.xlane.f32.xlu0 %v776
      %v778 = vpop.xlane.xlu0 %777
      %v779 = vsub.f32 %v771, %v778
      %v780 = vmul.f32 %v779, 1.442695
      %v781 = vpow.pop %v780
      %v782 = vsel %vm617, %v781, 0.0
      %783 = vadd.xlane.f32.xlu0 %v782
      %v784 = vpop.xlane.xlu0 %783
      %v785 = vrcp.pop %v784
      %v786 = vmul.f32 %v781, %v785
      %v787 = vpack.c.bf16 %v786, %v786
      %788 = vrot.lane.b32.xlu0 %v604, 56
      %v789 = vpop.permute.xlu0 %788
      %v791 = vsel %vm617, %v787, 0
      %v794 = vsel %vm681, %v789, 0
      %796 = vmatprep.subr.bf16.mxu0 0
      %797 = vmatpush1.bf16.msra.mxu0 0
      %798 = vmatprep.subr.bf16.mxu0 0
      %799 = vmatpush1.bf16.msra.mxu0 0
      %800 = vmatprep.subr.bf16.mxu0 0
      %801 = vmatpush1.bf16.msra.mxu0 0
      %802 = vmatprep.subr.bf16.mxu0 0
      %803 = vmatpush1.bf16.msra.mxu0 0
      %804 = vmatprep.subr.bf16.mxu0 0
      %805 = vmatpush1.bf16.msra.mxu0 0
      %806 = vmatprep.subr.bf16.mxu0 0
      %807 = vmatpush1.bf16.msra.mxu0 0
      %808 = vmatprep.subr.bf16.mxu0 0
      %809 = vmatpush1.bf16.msra.mxu0 0
      %810 = vmatprep.subr.bf16.mxu0 0
      %811 = vmatpush1.bf16.msra.mxu0 %v794
      %812 = vmatprep.subr.bf16.mxu0 0
      %813 = vmatpush2.bf16.msra.mxu0 0
      %814 = vmatprep.subr.bf16.mxu0 0
      %815 = vmatpush2.bf16.msra.mxu0 0
      %816 = vmatprep.subr.bf16.mxu0 0
      %817 = vmatpush2.bf16.msra.mxu0 0
      %818 = vmatprep.subr.bf16.mxu0 0
      %819 = vmatpush2.bf16.msra.mxu0 0
      %820 = vmatprep.subr.bf16.mxu0 0
      %821 = vmatpush2.bf16.msra.mxu0 0
      %822 = vmatprep.subr.bf16.mxu0 0
      %823 = vmatpush2.bf16.msra.mxu0 0
      %824 = vmatprep.subr.bf16.mxu0 0
      %825 = vmatpush2.bf16.msra.mxu0 0
      %826 = vmatprep.subr.bf16.mxu0 0
      %827 = vmatpush2.bf16.msra.mxu0 0
      %828 = vmatprep.mubr.bf16.mxu0 0
      %829 = vmatmul.mubr.bf16.gmra.mxu0 %v791
      %v830 = vpop.f32.mrf.mxu0
      %v831 = vadd.f32 0.0, %v830
      %v832 = vpop.f32.mrf.mxu0
      %v833 = vpop.f32.mrf.mxu0
      %v834 = vpop.f32.mrf.mxu0
      %835 = vdwg.mxu0
      %837 = vrot.lane.b32.xlu0 %v831, 8
      %v838 = vpop.permute.xlu0 %837
      %vm840 = vcmask 130112
      %841 = vst.msk [vmem:[#allocation2] sm:$0xff] %vm840, %v838
      %842 = vrot.lane.b32.xlu0 %v604, 112
      %v843 = vpop.permute.xlu0 %842
      %844 = vrot.lane.b32.xlu0 %v604, 80
      %v845 = vpop.permute.xlu0 %844
      %v847 = vsel %vm617, %v843, 0
      %v850 = vsel %vm617, %v845, 0
      %852 = vmatprep.subr.bf16.mxu0 0
      %853 = vmatpush1.bf16.xpose.msra.mxu0 0
      %854 = vmatprep.subr.bf16.mxu0 0
      %855 = vmatpush1.bf16.xpose.msra.mxu0 0
      %856 = vmatprep.subr.bf16.mxu0 0
      %857 = vmatpush1.bf16.xpose.msra.mxu0 0
      %858 = vmatprep.subr.bf16.mxu0 0
      %859 = vmatpush1.bf16.xpose.msra.mxu0 0
      %860 = vmatprep.subr.bf16.mxu0 0
      %861 = vmatpush1.bf16.xpose.msra.mxu0 0
      %862 = vmatprep.subr.bf16.mxu0 0
      %863 = vmatpush1.bf16.xpose.msra.mxu0 0
      %864 = vmatprep.subr.bf16.mxu0 0
      %865 = vmatpush1.bf16.xpose.msra.mxu0 0
      %866 = vmatprep.subr.bf16.mxu0 0
      %867 = vmatpush1.bf16.xpose.msra.mxu0 %v850
      %868 = vmatprep.subr.bf16.mxu0 0
      %869 = vmatpush2.bf16.xpose.msra.mxu0 0
      %870 = vmatprep.subr.bf16.mxu0 0
      %871 = vmatpush2.bf16.xpose.msra.mxu0 0
      %872 = vmatprep.subr.bf16.mxu0 0
      %873 = vmatpush2.bf16.xpose.msra.mxu0 0
      %874 = vmatprep.subr.bf16.mxu0 0
      %875 = vmatpush2.bf16.xpose.msra.mxu0 0
      %876 = vmatprep.subr.bf16.mxu0 0
      %877 = vmatpush2.bf16.xpose.msra.mxu0 0
      %878 = vmatprep.subr.bf16.mxu0 0
      %879 = vmatpush2.bf16.xpose.msra.mxu0 0
      %880 = vmatprep.subr.bf16.mxu0 0
      %881 = vmatpush2.bf16.xpose.msra.mxu0 0
      %882 = vmatprep.subr.bf16.mxu0 0
      %883 = vmatpush2.bf16.xpose.msra.mxu0 0
      %884 = vmatprep.mubr.bf16.mxu0 0
      %885 = vmatmul.mubr.bf16.gmra.mxu0 %v847
      %v886 = vpop.f32.mrf.mxu0
      %v887 = vadd.f32 %v613, %v886
      %v888 = vpop.f32.mrf.mxu0
      %v889 = vpop.f32.mrf.mxu0
      %v890 = vpop.f32.mrf.mxu0
      %891 = vdwg.mxu0
      %v892 = vsel %vm617, %v887, -inf
      %893 = vmax.xlane.f32.xlu0 %v892
      %v894 = vpop.xlane.xlu0 %893
      %v895 = vsub.f32 %v887, %v894
      %v896 = vmul.f32 %v895, 1.442695
      %v897 = vpow.pop %v896
      %v898 = vsel %vm617, %v897, 0.0
      %899 = vadd.xlane.f32.xlu0 %v898
      %v900 = vpop.xlane.xlu0 %899
      %v901 = vrcp.pop %v900
      %v902 = vmul.f32 %v897, %v901
      %v903 = vpack.c.bf16 %v902, %v902
      %904 = vrot.lane.b32.xlu0 %v604, 48
      %v905 = vpop.permute.xlu0 %904
      %v907 = vsel %vm617, %v903, 0
      %v910 = vsel %vm681, %v905, 0
      %912 = vmatprep.subr.bf16.mxu0 0
      %913 = vmatpush1.bf16.msra.mxu0 0
      %914 = vmatprep.subr.bf16.mxu0 0
      %915 = vmatpush1.bf16.msra.mxu0 0
      %916 = vmatprep.subr.bf16.mxu0 0
      %917 = vmatpush1.bf16.msra.mxu0 0
      %918 = vmatprep.subr.bf16.mxu0 0
      %919 = vmatpush1.bf16.msra.mxu0 0
      %920 = vmatprep.subr.bf16.mxu0 0
      %921 = vmatpush1.bf16.msra.mxu0 0
      %922 = vmatprep.subr.bf16.mxu0 0
      %923 = vmatpush1.bf16.msra.mxu0 0
      %924 = vmatprep.subr.bf16.mxu0 0
      %925 = vmatpush1.bf16.msra.mxu0 0
      %926 = vmatprep.subr.bf16.mxu0 0
      %927 = vmatpush1.bf16.msra.mxu0 %v910
      %928 = vmatprep.subr.bf16.mxu0 0
      %929 = vmatpush2.bf16.msra.mxu0 0
      %930 = vmatprep.subr.bf16.mxu0 0
      %931 = vmatpush2.bf16.msra.mxu0 0
      %932 = vmatprep.subr.bf16.mxu0 0
      %933 = vmatpush2.bf16.msra.mxu0 0
      %934 = vmatprep.subr.bf16.mxu0 0
      %935 = vmatpush2.bf16.msra.mxu0 0
      %936 = vmatprep.subr.bf16.mxu0 0
      %937 = vmatpush2.bf16.msra.mxu0 0
      %938 = vmatprep.subr.bf16.mxu0 0
      %939 = vmatpush2.bf16.msra.mxu0 0
      %940 = vmatprep.subr.bf16.mxu0 0
      %941 = vmatpush2.bf16.msra.mxu0 0
      %942 = vmatprep.subr.bf16.mxu0 0
      %943 = vmatpush2.bf16.msra.mxu0 0
      %944 = vmatprep.mubr.bf16.mxu0 0
      %945 = vmatmul.mubr.bf16.gmra.mxu0 %v907
      %v946 = vpop.f32.mrf.mxu0
      %v947 = vadd.f32 0.0, %v946
      %v948 = vpop.f32.mrf.mxu0
      %v949 = vpop.f32.mrf.mxu0
      %v950 = vpop.f32.mrf.mxu0
      %951 = vdwg.mxu0
      %953 = vrot.lane.b32.xlu0 %v947, 16
      %v954 = vpop.permute.xlu0 %953
      %vm956 = vcmask 195712
      %957 = vst.msk [vmem:[#allocation2] sm:$0xff] %vm956, %v954
      %958 = vrot.lane.b32.xlu0 %v604, 104
      %v959 = vpop.permute.xlu0 %958
      %960 = vrot.lane.b32.xlu0 %v604, 72
      %v961 = vpop.permute.xlu0 %960
      %v963 = vsel %vm617, %v959, 0
      %v966 = vsel %vm617, %v961, 0
      %968 = vmatprep.subr.bf16.mxu0 0
      %969 = vmatpush1.bf16.xpose.msra.mxu0 0
      %970 = vmatprep.subr.bf16.mxu0 0
      %971 = vmatpush1.bf16.xpose.msra.mxu0 0
      %972 = vmatprep.subr.bf16.mxu0 0
      %973 = vmatpush1.bf16.xpose.msra.mxu0 0
      %974 = vmatprep.subr.bf16.mxu0 0
      %975 = vmatpush1.bf16.xpose.msra.mxu0 0
      %976 = vmatprep.subr.bf16.mxu0 0
      %977 = vmatpush1.bf16.xpose.msra.mxu0 0
      %978 = vmatprep.subr.bf16.mxu0 0
      %979 = vmatpush1.bf16.xpose.msra.mxu0 0
      %980 = vmatprep.subr.bf16.mxu0 0
      %981 = vmatpush1.bf16.xpose.msra.mxu0 0
      %982 = vmatprep.subr.bf16.mxu0 0
      %983 = vmatpush1.bf16.xpose.msra.mxu0 %v966
      %984 = vmatprep.subr.bf16.mxu0 0
      %985 = vmatpush2.bf16.xpose.msra.mxu0 0
      %986 = vmatprep.subr.bf16.mxu0 0
      %987 = vmatpush2.bf16.xpose.msra.mxu0 0
      %988 = vmatprep.subr.bf16.mxu0 0
      %989 = vmatpush2.bf16.xpose.msra.mxu0 0
      %990 = vmatprep.subr.bf16.mxu0 0
      %991 = vmatpush2.bf16.xpose.msra.mxu0 0
      %992 = vmatprep.subr.bf16.mxu0 0
      %993 = vmatpush2.bf16.xpose.msra.mxu0 0
      %994 = vmatprep.subr.bf16.mxu0 0
      %995 = vmatpush2.bf16.xpose.msra.mxu0 0
      %996 = vmatprep.subr.bf16.mxu0 0
      %997 = vmatpush2.bf16.xpose.msra.mxu0 0
      %998 = vmatprep.subr.bf16.mxu0 0
      %999 = vmatpush2.bf16.xpose.msra.mxu0 0
      %1000 = vmatprep.mubr.bf16.mxu0 0
      %1001 = vmatmul.mubr.bf16.gmra.mxu0 %v963
      %v1002 = vpop.f32.mrf.mxu0
      %v1003 = vadd.f32 %v613, %v1002
      %v1004 = vpop.f32.mrf.mxu0
      %v1005 = vpop.f32.mrf.mxu0
      %v1006 = vpop.f32.mrf.mxu0
      %1007 = vdwg.mxu0
      %v1008 = vsel %vm617, %v1003, -inf
      %1009 = vmax.xlane.f32.xlu0 %v1008
      %v1010 = vpop.xlane.xlu0 %1009
      %v1011 = vsub.f32 %v1003, %v1010
      %v1012 = vmul.f32 %v1011, 1.442695
      %v1013 = vpow.pop %v1012
      %v1014 = vsel %vm617, %v1013, 0.0
      %1015 = vadd.xlane.f32.xlu0 %v1014
      %v1016 = vpop.xlane.xlu0 %1015
      %v1017 = vrcp.pop %v1016
      %v1018 = vmul.f32 %v1013, %v1017
      %v1019 = vpack.c.bf16 %v1018, %v1018
      %1020 = vrot.lane.b32.xlu0 %v604, 40
      %v1021 = vpop.permute.xlu0 %1020
      %v1023 = vsel %vm617, %v1019, 0
      %v1026 = vsel %vm681, %v1021, 0
      %1028 = vmatprep.subr.bf16.mxu0 0
      %1029 = vmatpush1.bf16.msra.mxu0 0
      %1030 = vmatprep.subr.bf16.mxu0 0
      %1031 = vmatpush1.bf16.msra.mxu0 0
      %1032 = vmatprep.subr.bf16.mxu0 0
      %1033 = vmatpush1.bf16.msra.mxu0 0
      %1034 = vmatprep.subr.bf16.mxu0 0
      %1035 = vmatpush1.bf16.msra.mxu0 0
      %1036 = vmatprep.subr.bf16.mxu0 0
      %1037 = vmatpush1.bf16.msra.mxu0 0
      %1038 = vmatprep.subr.bf16.mxu0 0
      %1039 = vmatpush1.bf16.msra.mxu0 0
      %1040 = vmatprep.subr.bf16.mxu0 0
      %1041 = vmatpush1.bf16.msra.mxu0 0
      %1042 = vmatprep.subr.bf16.mxu0 0
      %1043 = vmatpush1.bf16.msra.mxu0 %v1026
      %1044 = vmatprep.subr.bf16.mxu0 0
      %1045 = vmatpush2.bf16.msra.mxu0 0
      %1046 = vmatprep.subr.bf16.mxu0 0
      %1047 = vmatpush2.bf16.msra.mxu0 0
      %1048 = vmatprep.subr.bf16.mxu0 0
      %1049 = vmatpush2.bf16.msra.mxu0 0
      %1050 = vmatprep.subr.bf16.mxu0 0
      %1051 = vmatpush2.bf16.msra.mxu0 0
      %1052 = vmatprep.subr.bf16.mxu0 0
      %1053 = vmatpush2.bf16.msra.mxu0 0
      %1054 = vmatprep.subr.bf16.mxu0 0
      %1055 = vmatpush2.bf16.msra.mxu0 0
      %1056 = vmatprep.subr.bf16.mxu0 0
      %1057 = vmatpush2.bf16.msra.mxu0 0
      %1058 = vmatprep.subr.bf16.mxu0 0
      %1059 = vmatpush2.bf16.msra.mxu0 0
      %1060 = vmatprep.mubr.bf16.mxu0 0
      %1061 = vmatmul.mubr.bf16.gmra.mxu0 %v1023
      %v1062 = vpop.f32.mrf.mxu0
      %v1063 = vadd.f32 0.0, %v1062
      %v1064 = vpop.f32.mrf.mxu0
      %v1065 = vpop.f32.mrf.mxu0
      %v1066 = vpop.f32.mrf.mxu0
      %1067 = vdwg.mxu0
      %1069 = vrot.lane.b32.xlu0 %v1063, 24
      %v1070 = vpop.permute.xlu0 %1069
      %vm1072 = vcmask 261312
      %1073 = vst.msk [vmem:[#allocation2] sm:$0xff] %vm1072, %v1070
      %v1074 = vld [vmem:[#allocation2] sm:$0xff]
      %v1075 = vpack.c.bf16 %v1074, %v1074
      %v1076 = vld [vmem:[%s7] sm:$0xf]
      %v1077 = vld [vmem:[%s7 + $0x4] sm:$0xf]
      %v1078 = vld [vmem:[%s7 + $0x8] sm:$0xf]
      %v1079 = vld [vmem:[%s7 + $0xc] sm:$0xf]
      %v1080 = vld [vmem:[%s8] sm:$0x1]
      %v1082 = vlaneseq
      %v1083 = vshrl.u32 %v1082, 7
      %v1084 = vsub.s32 0, %v1083
      %v1085 = vrot.slane %v1080, %v1084
      %v1091 = vunpack.c.l.b16 %v1076
      %v1092 = vunpack.c.l.b16 %v1077
      %v1093 = vunpack.c.l.b16 %v1078
      %v1094 = vunpack.c.l.b16 %v1079
      %v1095 = vpack.c.b16 %v1092, %v1091
      %v1096 = vpack.c.b16 %v1094, %v1093
      %v1100 = vsel %vm508, %v1075, 0
      %1102 = vmatprep.subr.bf16.mxu0 0
      %1103 = vmatpush1.bf16.msra.mxu0 0
      %1104 = vmatprep.subr.bf16.mxu0 0
      %1105 = vmatpush1.bf16.msra.mxu0 0
      %1106 = vmatprep.subr.bf16.mxu0 0
      %1107 = vmatpush1.bf16.msra.mxu0 0
      %1108 = vmatprep.subr.bf16.mxu0 0
      %1109 = vmatpush1.bf16.msra.mxu0 0
      %1110 = vmatprep.subr.bf16.mxu0 0
      %1111 = vmatpush1.bf16.msra.mxu0 0
      %1112 = vmatprep.subr.bf16.mxu0 0
      %1113 = vmatpush1.bf16.msra.mxu0 0
      %1114 = vmatprep.subr.bf16.mxu0 0
      %1115 = vmatpush1.bf16.msra.mxu0 %v1096
      %1116 = vmatprep.subr.bf16.mxu0 0
      %1117 = vmatpush1.bf16.msra.mxu0 %v1095
      %1118 = vmatprep.subr.bf16.mxu0 0
      %1119 = vmatpush2.bf16.msra.mxu0 0
      %1120 = vmatprep.subr.bf16.mxu0 0
      %1121 = vmatpush2.bf16.msra.mxu0 0
      %1122 = vmatprep.subr.bf16.mxu0 0
      %1123 = vmatpush2.bf16.msra.mxu0 0
      %1124 = vmatprep.subr.bf16.mxu0 0
      %1125 = vmatpush2.bf16.msra.mxu0 0
      %1126 = vmatprep.subr.bf16.mxu0 0
      %1127 = vmatpush2.bf16.msra.mxu0 0
      %1128 = vmatprep.subr.bf16.mxu0 0
      %1129 = vmatpush2.bf16.msra.mxu0 0
      %1130 = vmatprep.subr.bf16.mxu0 0
      %1131 = vmatpush2.bf16.msra.mxu0 0
      %1132 = vmatprep.subr.bf16.mxu0 0
      %1133 = vmatpush2.bf16.msra.mxu0 0
      %1134 = vmatprep.mubr.bf16.mxu0 0
      %1135 = vmatmul.mubr.bf16.gmra.mxu0 %v1100
      %v1136 = vpop.f32.mrf.mxu0
      %v1137 = vadd.f32 %v1085, %v1136
      %v1138 = vpop.f32.mrf.mxu0
      %v1139 = vpop.f32.mrf.mxu0
      %v1140 = vpop.f32.mrf.mxu0
      %1141 = vdwg.mxu0
      %v1142 = vadd.f32 %v505, %v1137
      %v1143 = vld [vmem:[%s9] sm:$0x1]
      %v1144 = vld [vmem:[%s10] sm:$0x1]
      %v1145 = vsel %vm508, %v1142, 0.0
      %1146 = vadd.xlane.f32.xlu0 %v1145
      %v1147 = vpop.xlane.xlu0 %1146
      %v1148 = vmul.f32 %v1147, %v512
      %v1149 = vsub.f32 %v1142, %v1148
      %v1150 = vmul.f32 %v1149, %v1149
      %v1151 = vsel %vm508, %v1150, 0.0
      %1152 = vadd.xlane.f32.xlu0 %v1151
      %v1153 = vpop.xlane.xlu0 %1152
      %v1154 = vmul.f32 %v1153, %v512
      %v1155 = vadd.f32 %v1154, 1e-05
      %v1156 = vrsqrt.pop %v1155
      %v1157 = vmul.f32 %v1149, %v1156
      %v1159 = vlaneseq
      %v1160 = vshrl.u32 %v1159, 7
      %v1161 = vsub.s32 0, %v1160
      %v1162 = vrot.slane %v1143, %v1161
      %v1164 = vmul.f32 %v1157, %v1162
      %v1166 = vlaneseq
      %v1167 = vshrl.u32 %v1166, 7
      %v1168 = vsub.s32 0, %v1167
      %v1169 = vrot.slane %v1144, %v1168
      %v1171 = vadd.f32 %v1164, %v1169
      %v1172 = vpack.c.bf16 %v1171, %v1171
      %v1173 = vld [vmem:[%s11] sm:$0xf]
      %v1174 = vld [vmem:[%s11 + $0x4] sm:$0xf]
      %v1175 = vld [vmem:[%s11 + $0x8] sm:$0xf]
      %v1176 = vld [vmem:[%s11 + $0xc] sm:$0xf]
      %v1177 = vld [vmem:[%s12] sm:$0x1]
      %v1179 = vlaneseq
      %v1180 = vshrl.u32 %v1179, 7
      %v1181 = vsub.s32 0, %v1180
      %v1182 = vrot.slane %v1177, %v1181
      %v1188 = vunpack.c.l.b16 %v1173
      %v1189 = vunpack.c.l.b16 %v1174
      %v1190 = vunpack.c.l.b16 %v1175
      %v1191 = vunpack.c.l.b16 %v1176
      %v1192 = vpack.c.b16 %v1189, %v1188
      %v1193 = vpack.c.b16 %v1191, %v1190
      %v1197 = vsel %vm508, %v1172, 0
      %1199 = vmatprep.subr.bf16.mxu0 0
      %1200 = vmatpush1.bf16.msra.mxu0 0
      %1201 = vmatprep.subr.bf16.mxu0 0
      %1202 = vmatpush1.bf16.msra.mxu0 0
      %1203 = vmatprep.subr.bf16.mxu0 0
      %1204 = vmatpush1.bf16.msra.mxu0 0
      %1205 = vmatprep.subr.bf16.mxu0 0
      %1206 = vmatpush1.bf16.msra.mxu0 0
      %1207 = vmatprep.subr.bf16.mxu0 0
      %1208 = vmatpush1.bf16.msra.mxu0 0
      %1209 = vmatprep.subr.bf16.mxu0 0
      %1210 = vmatpush1.bf16.msra.mxu0 0
      %1211 = vmatprep.subr.bf16.mxu0 0
      %1212 = vmatpush1.bf16.msra.mxu0 %v1193
      %1213 = vmatprep.subr.bf16.mxu0 0
      %1214 = vmatpush1.bf16.msra.mxu0 %v1192
      %1215 = vmatprep.subr.bf16.mxu0 0
      %1216 = vmatpush2.bf16.msra.mxu0 0
      %1217 = vmatprep.subr.bf16.mxu0 0
      %1218 = vmatpush2.bf16.msra.mxu0 0
      %1219 = vmatprep.subr.bf16.mxu0 0
      %1220 = vmatpush2.bf16.msra.mxu0 0
      %1221 = vmatprep.subr.bf16.mxu0 0
      %1222 = vmatpush2.bf16.msra.mxu0 0
      %1223 = vmatprep.subr.bf16.mxu0 0
      %1224 = vmatpush2.bf16.msra.mxu0 0
      %1225 = vmatprep.subr.bf16.mxu0 0
      %1226 = vmatpush2.bf16.msra.mxu0 0
      %1227 = vmatprep.subr.bf16.mxu0 0
      %1228 = vmatpush2.bf16.msra.mxu0 0
      %1229 = vmatprep.subr.bf16.mxu0 0
      %1230 = vmatpush2.bf16.msra.mxu0 0
      %1231 = vmatprep.mubr.bf16.mxu0 0
      %1232 = vmatmul.mubr.bf16.gmra.mxu0 %v1197
      %v1233 = vpop.f32.mrf.mxu0
      %v1234 = vadd.f32 %v1182, %v1233
      %v1235 = vpop.f32.mrf.mxu0
      %v1236 = vpop.f32.mrf.mxu0
      %v1237 = vpop.f32.mrf.mxu0
      %1238 = vdwg.mxu0
      %v1239 = vmax.f32 %v1234, 0.0
      %v1240 = vpack.c.bf16 %v1239, %v1239
      %v1241 = vld [vmem:[%s13] sm:$0xf]
      %v1242 = vld [vmem:[%s13 + $0x4] sm:$0xf]
      %v1243 = vld [vmem:[%s13 + $0x8] sm:$0xf]
      %v1244 = vld [vmem:[%s13 + $0xc] sm:$0xf]
      %v1245 = vld [vmem:[%s13 + $0x10] sm:$0xf]
      %v1246 = vld [vmem:[%s13 + $0x14] sm:$0xf]
      %v1247 = vld [vmem:[%s13 + $0x18] sm:$0xf]
      %v1248 = vld [vmem:[%s13 + $0x1c] sm:$0xf]
      %v1249 = vld [vmem:[%s14] sm:$0x1]
      %v1251 = vlaneseq
      %v1252 = vshrl.u32 %v1251, 7
      %v1253 = vsub.s32 0, %v1252
      %v1254 = vrot.slane %v1249, %v1253
      %v1264 = vunpack.c.l.b16 %v1241
      %v1265 = vunpack.c.l.b16 %v1242
      %v1266 = vunpack.c.l.b16 %v1243
      %v1267 = vunpack.c.l.b16 %v1244
      %v1268 = vunpack.c.l.b16 %v1245
      %v1269 = vunpack.c.l.b16 %v1246
      %v1270 = vunpack.c.l.b16 %v1247
      %v1271 = vunpack.c.l.b16 %v1248
      %v1272 = vpack.c.b16 %v1265, %v1264
      %v1273 = vpack.c.b16 %v1267, %v1266
      %v1274 = vpack.c.b16 %v1269, %v1268
      %v1275 = vpack.c.b16 %v1271, %v1270
      %vm1280 = vcmask 523264
      %v1282 = vsel %vm1280, %v1240, 0
      %1284 = vmatprep.subr.bf16.mxu0 0
      %1285 = vmatpush1.bf16.msra.mxu0 0
      %1286 = vmatprep.subr.bf16.mxu0 0
      %1287 = vmatpush1.bf16.msra.mxu0 0
      %1288 = vmatprep.subr.bf16.mxu0 0
      %1289 = vmatpush1.bf16.msra.mxu0 0
      %1290 = vmatprep.subr.bf16.mxu0 0
      %1291 = vmatpush1.bf16.msra.mxu0 0
      %1292 = vmatprep.subr.bf16.mxu0 0
      %1293 = vmatpush1.bf16.msra.mxu0 %v1275
      %1294 = vmatprep.subr.bf16.mxu0 0
      %1295 = vmatpush1.bf16.msra.mxu0 %v1274
      %1296 = vmatprep.subr.bf16.mxu0 0
      %1297 = vmatpush1.bf16.msra.mxu0 %v1273
      %1298 = vmatprep.subr.bf16.mxu0 0
      %1299 = vmatpush1.bf16.msra.mxu0 %v1272
      %1300 = vmatprep.subr.bf16.mxu0 0
      %1301 = vmatpush2.bf16.msra.mxu0 0
      %1302 = vmatprep.subr.bf16.mxu0 0
      %1303 = vmatpush2.bf16.msra.mxu0 0
      %1304 = vmatprep.subr.bf16.mxu0 0
      %1305 = vmatpush2.bf16.msra.mxu0 0
      %1306 = vmatprep.subr.bf16.mxu0 0
      %1307 = vmatpush2.bf16.msra.mxu0 0
      %1308 = vmatprep.subr.bf16.mxu0 0
      %1309 = vmatpush2.bf16.msra.mxu0 0
      %1310 = vmatprep.subr.bf16.mxu0 0
      %1311 = vmatpush2.bf16.msra.mxu0 0
      %1312 = vmatprep.subr.bf16.mxu0 0
      %1313 = vmatpush2.bf16.msra.mxu0 0
      %1314 = vmatprep.subr.bf16.mxu0 0
      %1315 = vmatpush2.bf16.msra.mxu0 0
      %1316 = vmatprep.mubr.bf16.mxu0 0
      %1317 = vmatmul.mubr.bf16.gmra.mxu0 %v1282
      %v1318 = vpop.f32.mrf.mxu0
      %v1319 = vadd.f32 %v1254, %v1318
      %v1320 = vpop.f32.mrf.mxu0
      %v1321 = vpop.f32.mrf.mxu0
      %v1322 = vpop.f32.mrf.mxu0
      %1323 = vdwg.mxu0
      %v1324 = vadd.f32 %v1142, %v1319
      %1325 = vst.msk [vmem:[%s503] sm:$0xff] %vm508, %v1324
      %p1326 = scmp.lt.s32.totalorder %s26, 1
      %s1327 = scalar_select %p1326, %s26, 1
      %s1328 = smul.addr %s1327, 8
      %s1329 = scalar_lea.vmem %s15, %s1328
      // Predicated region
      $region81: #{gpt2_forward.3} parent=79 // pred_check
        %p1330 = pneg %p369
      $region82: #{gpt2_forward.3} parent=79 // pred_check_branch
        %1332 = sbr.rel (%p1330) target = $region84
      $region83: #{gpt2_forward.3} parent=79 // pred_region
        _
      $region84: #{gpt2_forward.3} parent=79 // pred_fallthru
        _
    $region80: #{gpt2_forward.3} parent=5 // pred_fallthru
      _
    %p1333 = scmp.le.s32.totalorder 2, %s21
    // Predicated region
    $region85: #{gpt2_forward.3} parent=5 // pred_check
      %p1334 = pneg %p1333
    $region86: #{gpt2_forward.3} parent=5 // pred_check_branch
      %1336 = sbr.rel (%p1334) target = $region88
    $region87: #{gpt2_forward.3} parent=5 // pred_region
      %s1337 = ssub.s32 %s21, 2
      // Predicated region
      $region89: #{gpt2_forward.3} parent=87 // pred_check
        %p1338 = pneg %p375
      $region90: #{gpt2_forward.3} parent=87 // pred_check_branch
        %1340 = sbr.rel (%p1338) target = $region92
      $region91: #{gpt2_forward.3} parent=87 // pred_region
        %p1341 = scmp.lt.s32.totalorder %s27, 1
        %s1342 = scalar_select %p1341, %s27, 1
        %s1343 = smul.addr %s1342, 8
        %s1344 = scalar_lea.vmem %s15, %s1343
      $region92: #{gpt2_forward.3} parent=87 // pred_fallthru
        _
    $region88: #{gpt2_forward.3} parent=5 // pred_fallthru
      _
  $region6: #{gpt2_forward.3} parent=0 // loop_footer
    %s25 = sadd.s32 1, %s21
  $region7: #{gpt2_forward.3} parent=0 // loop_footer_branch
    %20 = sbr.rel target = $region3
  $region8: #{gpt2_forward.3} parent=0 // loop_exit
    _

</llo_original>
